<compile_context>
chip_gen: v5e
topology: v5e:2x2
jax: 0.10.0
libtpu: 0.0.40
codegen_flags: <defaults>
</compile_context>

<pallas_src>
import functools

import jax
import jax.numpy as jnp
from jax import lax
from jax.experimental import pallas as pl
from jax.experimental.pallas import tpu as pltpu

MARGIN = 3           # max 'same' padding needed (spatial attention, k=7)
NEG_BIG = -3.0e38    # -inf sentinel for maxpool 'same' padding


def _sigmoid(z):
    # reciprocal goes to the EUP slot instead of a VALU divide
    return pl.reciprocal(1.0 + jnp.exp(-z), approx=True)


# ------------------------------ fused kernel -------------------------------

def my_icb_kernel(x_ref, wbd_ref, dw2_ref, dw3_ref, scat_ref, tcat_ref,
                  se1t_ref, se2_ref, wc_ref, sc_ref, tc_ref,
                  dwsa_ref, ssa_ref, tsa_ref,
                  o_ref, pbuf_ref, *, Cin, L):
    f32 = jnp.float32
    bf16 = jnp.bfloat16
    x = x_ref[0].astype(f32)                                    # (Cin, L)

    # ---- padded copy of x: zero ONLY the border columns, interior once ----
    zcol = jnp.zeros((Cin, MARGIN), f32)
    pbuf_ref[:, 0:MARGIN] = zcol
    pbuf_ref[:, MARGIN + L:MARGIN + L + MARGIN] = zcol
    pbuf_ref[:, MARGIN:MARGIN + L] = x
    xp = pbuf_ref[...]                                          # single load

    def depthwise(xpad, dw_ref, K):
        # 'same' depthwise conv along L; taps are slices of the padded value.
        pad = (K - 1) // 2
        dwf = dw_ref[...].astype(f32)                           # (Cin, K), hoisted
        acc = xpad[:, MARGIN - pad:MARGIN - pad + L] * dwf[:, 0:1]
        for k in range(1, K):                                   # static unroll
            s = MARGIN - pad + k
            acc = acc + xpad[:, s:s + L] * dwf[:, k:k + 1]
        return acc

    d2 = depthwise(xp, dw2_ref, 3)                              # branch2 dw k=3
    d3 = depthwise(xp, dw3_ref, 5)                              # branch3 dw k=5

    # ---- branch4 maxpool(k=3,s=1,pad=1): -inf padding via edge masks ----
    col = lax.broadcasted_iota(jnp.int32, (Cin, L), 1)
    left = jnp.where(col == 0, NEG_BIG, xp[:, MARGIN - 1:MARGIN - 1 + L])
    right = jnp.where(col == L - 1, NEG_BIG, xp[:, MARGIN + 1:MARGIN + 1 + L])
    mp = jnp.maximum(xp[:, MARGIN:MARGIN + L], jnp.maximum(left, right))

    # ---- all four branch 1x1 convs as ONE block-diagonal matmul ----
    a = jnp.concatenate([x, d2, d3, mp], axis=0).astype(bf16)   # (4*Cin, L)
    pre = jnp.dot(wbd_ref[...], a, preferred_element_type=f32)  # (4H, L)
    combined = jnp.maximum(pre * scat_ref[...] + tcat_ref[...], 0.0)

    # ---- SE channel attention (matvecs as VPU mul + XLU reduce) ----
    pooled = jnp.mean(combined, axis=1, keepdims=True)                  # (4H,1)
    h = jnp.maximum(
        jnp.sum(se1t_ref[...] * pooled, axis=0, keepdims=True), 0.0)    # (1,R)
    gate = _sigmoid(jnp.sum(se2_ref[...] * h, axis=1, keepdims=True))   # (4H,1)
    combined = combined * gate

    # ---- combine 1x1 conv (4H -> Cin) + BN + ReLU ----
    comb = jnp.dot(wc_ref[...], combined.astype(bf16),
                   preferred_element_type=f32)                  # (Cin, L)
    comb = jnp.maximum(comb * sc_ref[...] + tc_ref[...], 0.0)

    # ---- spatial attention: depthwise k=7 + BN + sigmoid ----
    # border columns of pbuf are still zero; only rewrite the interior.
    pbuf_ref[:, MARGIN:MARGIN + L] = comb
    cp = pbuf_ref[...]
    sa = depthwise(cp, dwsa_ref, 7)
    attn = _sigmoid(sa * ssa_ref[...] + tsa_ref[...])

    out = jnp.maximum(comb * attn + x, 0.0)                     # residual+ReLU
    o_ref[0] = out.astype(o_ref.dtype)


# ------------------------------ host wrapper --------------------------------

@jax.jit
def my_icb_forward(x, params):
    """x: (B, Cin, L), same layout as the PyTorch module. No transposes."""
    B, Cin, L = x.shape

    def resident(p):   # full-array block, constant index -> stays VMEM-resident
        return pl.BlockSpec(p.shape, lambda b: (0,) * p.ndim)

    return pl.pallas_call(
        functools.partial(my_icb_kernel, Cin=Cin, L=L),
        out_shape=jax.ShapeDtypeStruct((B, Cin, L), jnp.float32),
        grid=(B,),
        in_specs=[pl.BlockSpec((1, Cin, L), lambda b: (b, 0, 0))]
                 + [resident(p) for p in params],
        out_specs=pl.BlockSpec((1, Cin, L), lambda b: (b, 0, 0)),
        scratch_shapes=[pltpu.VMEM((Cin, L + 2 * MARGIN), jnp.float32)],
        compiler_params=pltpu.CompilerParams(
            dimension_semantics=("parallel",)),
    )(x.astype(jnp.float32), *params)


# ----------------------------- parameter setup ------------------------------

def _fold_bn(key, c, eps=1e-5):
    k1, k2, k3, k4 = jax.random.split(key, 4)
    gamma = jax.random.uniform(k1, (c,), jnp.float32, 0.5, 1.5)
    beta = jax.random.uniform(k2, (c,), jnp.float32, -0.1, 0.1)
    mean = jax.random.uniform(k3, (c,), jnp.float32, -0.1, 0.1)
    var = jax.random.uniform(k4, (c,), jnp.float32, 0.5, 1.5)
    scale = gamma / jnp.sqrt(var + eps)
    shift = beta - mean * scale
    return scale, shift


def init_params(key, cin, hidden, reduction=16):
    """PyTorch-style uniform init, packed into the kernel's layouts."""
    h4 = 4 * hidden
    r = max(h4 // reduction, 1)
    keys = iter(jax.random.split(key, 24))

    def u(shape, fan_in):
        b = 1.0 / (fan_in ** 0.5)
        return jax.random.uniform(next(keys), shape, jnp.float32, -b, b)

    # per-branch pieces (torch Conv1d weight layout: (out, in))
    w1 = u((hidden, cin), cin)                      # branch1 1x1
    s1, t1 = _fold_bn(next(keys), hidden)
    dw2 = u((cin, 3), 3)                            # branch2 depthwise k=3
    w2 = u((hidden, cin), cin)
    s2, t2 = _fold_bn(next(keys), hidden)
    dw3 = u((cin, 5), 5)                            # branch3 depthwise k=5
    w3 = u((hidden, cin), cin)
    s3, t3 = _fold_bn(next(keys), hidden)
    w4 = u((hidden, cin), cin)                      # branch4 post-maxpool 1x1
    s4, t4 = _fold_bn(next(keys), hidden)

    # ONE block-diagonal (4H, 4*Cin) weight; block order = [x, d2, d3, mp]
    wbd = jnp.zeros((h4, 4 * cin), jnp.float32)
    for i, wi in enumerate((w1, w2, w3, w4)):
        wbd = wbd.at[i * hidden:(i + 1) * hidden, i * cin:(i + 1) * cin].set(wi)
    wbd = wbd.astype(jnp.bfloat16)

    scat = jnp.concatenate([s1, s2, s3, s4]).reshape(h4, 1)
    tcat = jnp.concatenate([t1, t2, t3, t4]).reshape(h4, 1)

    # SE block (torch Linear weights are (out, in))
    se1t = jnp.transpose(u((r, h4), h4))            # (4H, R) = fc1^T
    se2 = u((h4, r), r)                             # (4H, R) = fc2

    # combine conv (4H -> Cin) + BN
    wc = u((cin, h4), h4).astype(jnp.bfloat16)      # (Cin, 4H)
    sc, tc = _fold_bn(next(keys), cin)

    # spatial attention depthwise(k=7) + BN (+ sigmoid in kernel)
    dwsa = u((cin, 7), 7)
    ssa, tsa = _fold_bn(next(keys), cin)

    return (wbd, dw2, dw3, scat, tcat, se1t, se2, wc,
            sc.reshape(cin, 1), tc.reshape(cin, 1),
            dwsa, ssa.reshape(cin, 1), tsa.reshape(cin, 1))


# --------------------------------- driver -----------------------------------

if __name__ == "__main__":
    B, Cin, H, L = 2, 16, 32, 16      # in_features=16, hidden_features=32
    key = jax.random.PRNGKey(0)
    kx, kp = jax.random.split(key)
    x = jax.random.normal(kx, (B, Cin, L), jnp.float32)
    params = init_params(kp, Cin, H, reduction=16)

    out = my_icb_forward(x, params)
    jax.block_until_ready(out)

    assert out.shape == (B, Cin, L), out.shape
    assert out.dtype == jnp.float32
    assert bool(jnp.all(jnp.isfinite(out)))
    assert bool(jnp.all(out >= 0.0))   # final ReLU
    print("KERNEL_OK")
</pallas_src>

<mosaic_0001>
module attributes {stable_mosaic.version = 11 : i64} {
  func.func @my_icb_kernel(%arg0: i32, %arg1: memref<1x16x16xf32, #tpu.memory_space<vmem>>, %arg2: memref<128x64xbf16, #tpu.memory_space<vmem>>, %arg3: memref<16x3xf32, #tpu.memory_space<vmem>>, %arg4: memref<16x5xf32, #tpu.memory_space<vmem>>, %arg5: memref<128x1xf32, #tpu.memory_space<vmem>>, %arg6: memref<128x1xf32, #tpu.memory_space<vmem>>, %arg7: memref<128x8xf32, #tpu.memory_space<vmem>>, %arg8: memref<128x8xf32, #tpu.memory_space<vmem>>, %arg9: memref<16x128xbf16, #tpu.memory_space<vmem>>, %arg10: memref<16x1xf32, #tpu.memory_space<vmem>>, %arg11: memref<16x1xf32, #tpu.memory_space<vmem>>, %arg12: memref<16x7xf32, #tpu.memory_space<vmem>>, %arg13: memref<16x1xf32, #tpu.memory_space<vmem>>, %arg14: memref<16x1xf32, #tpu.memory_space<vmem>>, %arg15: memref<1x16x16xf32, #tpu.memory_space<vmem>>, %arg16: memref<16x22xf32, #tpu.memory_space<vmem>>) attributes {dimension_semantics = [#tpu.dimension_semantics<parallel>], iteration_bounds = array<i64: 2>, scalar_prefetch = 0 : i64, scratch_operands = 1 : i64, tpu.core_type = #tpu.core_type<tc>, window_params = [{transform_indices = @transform_0, window_bounds = array<i64: 1, 16, 16>}, {pipeline_mode = #tpu.pipeline_mode<synchronous>, transform_indices = @transform_1, window_bounds = array<i64: 128, 64>}, {pipeline_mode = #tpu.pipeline_mode<synchronous>, transform_indices = @transform_2, window_bounds = array<i64: 16, 3>}, {pipeline_mode = #tpu.pipeline_mode<synchronous>, transform_indices = @transform_3, window_bounds = array<i64: 16, 5>}, {pipeline_mode = #tpu.pipeline_mode<synchronous>, transform_indices = @transform_4, window_bounds = array<i64: 128, 1>}, {pipeline_mode = #tpu.pipeline_mode<synchronous>, transform_indices = @transform_5, window_bounds = array<i64: 128, 1>}, {pipeline_mode = #tpu.pipeline_mode<synchronous>, transform_indices = @transform_6, window_bounds = array<i64: 128, 8>}, {pipeline_mode = #tpu.pipeline_mode<synchronous>, transform_indices = @transform_7, window_bounds = array<i64: 128, 8>}, {pipeline_mode = #tpu.pipeline_mode<synchronous>, transform_indices = @transform_8, window_bounds = array<i64: 16, 128>}, {pipeline_mode = #tpu.pipeline_mode<synchronous>, transform_indices = @transform_9, window_bounds = array<i64: 16, 1>}, {pipeline_mode = #tpu.pipeline_mode<synchronous>, transform_indices = @transform_10, window_bounds = array<i64: 16, 1>}, {pipeline_mode = #tpu.pipeline_mode<synchronous>, transform_indices = @transform_11, window_bounds = array<i64: 16, 7>}, {pipeline_mode = #tpu.pipeline_mode<synchronous>, transform_indices = @transform_12, window_bounds = array<i64: 16, 1>}, {pipeline_mode = #tpu.pipeline_mode<synchronous>, transform_indices = @transform_13, window_bounds = array<i64: 16, 1>}, {transform_indices = @transform_14, window_bounds = array<i64: 1, 16, 16>}]} {
    %c0 = arith.constant 0 : index
    %c0_0 = arith.constant 0 : index
    %c0_1 = arith.constant 0 : index
    %0 = vector.load %arg1[%c0, %c0_0, %c0_1] : memref<1x16x16xf32, #tpu.memory_space<vmem>>, vector<1x16x16xf32>
    %1 = vector.shape_cast %0 : vector<1x16x16xf32> to vector<16x16xf32>
    %cst = arith.constant 0.000000e+00 : f32
    %2 = vector.broadcast %cst : f32 to vector<16x3xf32>
    %c0_2 = arith.constant 0 : index
    %c0_3 = arith.constant 0 : index
    %3 = vector.load %arg16[%c0_2, %c0_3] : memref<16x22xf32, #tpu.memory_space<vmem>>, vector<16x3xf32>
    tpu.vector_store %arg16[%c0_2, %c0_3], %2 {strides = array<i32>} : memref<16x22xf32, #tpu.memory_space<vmem>>, vector<16x3xf32>,
    %c0_4 = arith.constant 0 : index
    %c19 = arith.constant 19 : index
    %4 = vector.load %arg16[%c0_4, %c19] : memref<16x22xf32, #tpu.memory_space<vmem>>, vector<16x3xf32>
    tpu.vector_store %arg16[%c0_4, %c19], %2 {strides = array<i32>} : memref<16x22xf32, #tpu.memory_space<vmem>>, vector<16x3xf32>,
    %c0_5 = arith.constant 0 : index
    %c3 = arith.constant 3 : index
    %5 = vector.load %arg16[%c0_5, %c3] : memref<16x22xf32, #tpu.memory_space<vmem>>, vector<16x16xf32>
    tpu.vector_store %arg16[%c0_5, %c3], %1 {strides = array<i32>} : memref<16x22xf32, #tpu.memory_space<vmem>>, vector<16x16xf32>,
    %c0_6 = arith.constant 0 : index
    %c0_7 = arith.constant 0 : index
    %6 = vector.load %arg16[%c0_6, %c0_7] : memref<16x22xf32, #tpu.memory_space<vmem>>, vector<16x22xf32>
    %c0_8 = arith.constant 0 : index
    %c0_9 = arith.constant 0 : index
    %7 = vector.load %arg3[%c0_8, %c0_9] : memref<16x3xf32, #tpu.memory_space<vmem>>, vector<16x3xf32>
    %8 = vector.extract_strided_slice %6 {offsets = [0, 2], sizes = [16, 16], strides = [1, 1]} : vector<16x22xf32> to vector<16x16xf32>
    %9 = vector.extract_strided_slice %7 {offsets = [0, 0], sizes = [16, 1], strides = [1, 1]} : vector<16x3xf32> to vector<16x1xf32>
    %10 = vector.broadcast %9 : vector<16x1xf32> to vector<16x16xf32>
    %11 = arith.mulf %8, %10 : vector<16x16xf32>
    %12 = vector.extract_strided_slice %6 {offsets = [0, 3], sizes = [16, 16], strides = [1, 1]} : vector<16x22xf32> to vector<16x16xf32>
    %13 = vector.extract_strided_slice %7 {offsets = [0, 1], sizes = [16, 1], strides = [1, 1]} : vector<16x3xf32> to vector<16x1xf32>
    %14 = vector.broadcast %13 : vector<16x1xf32> to vector<16x16xf32>
    %15 = arith.mulf %12, %14 : vector<16x16xf32>
    %16 = arith.addf %11, %15 : vector<16x16xf32>
    %17 = vector.extract_strided_slice %6 {offsets = [0, 4], sizes = [16, 16], strides = [1, 1]} : vector<16x22xf32> to vector<16x16xf32>
    %18 = vector.extract_strided_slice %7 {offsets = [0, 2], sizes = [16, 1], strides = [1, 1]} : vector<16x3xf32> to vector<16x1xf32>
    %19 = vector.broadcast %18 : vector<16x1xf32> to vector<16x16xf32>
    %20 = arith.mulf %17, %19 : vector<16x16xf32>
    %21 = arith.addf %16, %20 : vector<16x16xf32>
    %c0_10 = arith.constant 0 : index
    %c0_11 = arith.constant 0 : index
    %22 = vector.load %arg4[%c0_10, %c0_11] : memref<16x5xf32, #tpu.memory_space<vmem>>, vector<16x5xf32>
    %23 = vector.extract_strided_slice %6 {offsets = [0, 1], sizes = [16, 16], strides = [1, 1]} : vector<16x22xf32> to vector<16x16xf32>
    %24 = vector.extract_strided_slice %22 {offsets = [0, 0], sizes = [16, 1], strides = [1, 1]} : vector<16x5xf32> to vector<16x1xf32>
    %25 = vector.broadcast %24 : vector<16x1xf32> to vector<16x16xf32>
    %26 = arith.mulf %23, %25 : vector<16x16xf32>
    %27 = vector.extract_strided_slice %6 {offsets = [0, 2], sizes = [16, 16], strides = [1, 1]} : vector<16x22xf32> to vector<16x16xf32>
    %28 = vector.extract_strided_slice %22 {offsets = [0, 1], sizes = [16, 1], strides = [1, 1]} : vector<16x5xf32> to vector<16x1xf32>
    %29 = vector.broadcast %28 : vector<16x1xf32> to vector<16x16xf32>
    %30 = arith.mulf %27, %29 : vector<16x16xf32>
    %31 = arith.addf %26, %30 : vector<16x16xf32>
    %32 = vector.extract_strided_slice %6 {offsets = [0, 3], sizes = [16, 16], strides = [1, 1]} : vector<16x22xf32> to vector<16x16xf32>
    %33 = vector.extract_strided_slice %22 {offsets = [0, 2], sizes = [16, 1], strides = [1, 1]} : vector<16x5xf32> to vector<16x1xf32>
    %34 = vector.broadcast %33 : vector<16x1xf32> to vector<16x16xf32>
    %35 = arith.mulf %32, %34 : vector<16x16xf32>
    %36 = arith.addf %31, %35 : vector<16x16xf32>
    %37 = vector.extract_strided_slice %6 {offsets = [0, 4], sizes = [16, 16], strides = [1, 1]} : vector<16x22xf32> to vector<16x16xf32>
    %38 = vector.extract_strided_slice %22 {offsets = [0, 3], sizes = [16, 1], strides = [1, 1]} : vector<16x5xf32> to vector<16x1xf32>
    %39 = vector.broadcast %38 : vector<16x1xf32> to vector<16x16xf32>
    %40 = arith.mulf %37, %39 : vector<16x16xf32>
    %41 = arith.addf %36, %40 : vector<16x16xf32>
    %42 = vector.extract_strided_slice %6 {offsets = [0, 5], sizes = [16, 16], strides = [1, 1]} : vector<16x22xf32> to vector<16x16xf32>
    %43 = vector.extract_strided_slice %22 {offsets = [0, 4], sizes = [16, 1], strides = [1, 1]} : vector<16x5xf32> to vector<16x1xf32>
    %44 = vector.broadcast %43 : vector<16x1xf32> to vector<16x16xf32>
    %45 = arith.mulf %42, %44 : vector<16x16xf32>
    %46 = arith.addf %41, %45 : vector<16x16xf32>
    %47 = tpu.iota {dimensions = array<i32: 1>} : vector<16x16xi32>
    %c0_i32 = arith.constant 0 : i32
    %48 = vector.broadcast %c0_i32 : i32 to vector<16x16xi32>
    %49 = arith.cmpi eq, %47, %48 : vector<16x16xi32>
    %50 = vector.extract_strided_slice %6 {offsets = [0, 2], sizes = [16, 16], strides = [1, 1]} : vector<16x22xf32> to vector<16x16xf32>
    %cst_12 = arith.constant -3.000000e+38 : f32
    %51 = vector.broadcast %cst_12 : f32 to vector<16x16xf32>
    %52 = arith.select %49, %51, %50 : vector<16x16xi1>, vector<16x16xf32>
    %c15_i32 = arith.constant 15 : i32
    %53 = vector.broadcast %c15_i32 : i32 to vector<16x16xi32>
    %54 = arith.cmpi eq, %47, %53 : vector<16x16xi32>
    %55 = vector.extract_strided_slice %6 {offsets = [0, 4], sizes = [16, 16], strides = [1, 1]} : vector<16x22xf32> to vector<16x16xf32>
    %cst_13 = arith.constant -3.000000e+38 : f32
    %56 = vector.broadcast %cst_13 : f32 to vector<16x16xf32>
    %57 = arith.select %54, %56, %55 : vector<16x16xi1>, vector<16x16xf32>
    %58 = vector.extract_strided_slice %6 {offsets = [0, 3], sizes = [16, 16], strides = [1, 1]} : vector<16x22xf32> to vector<16x16xf32>
    %59 = arith.maximumf %52, %57 : vector<16x16xf32>
    %60 = arith.maximumf %58, %59 : vector<16x16xf32>
    %61 = tpu.concatenate %1, %21, %46, %60 in 0 : vector<16x16xf32>, vector<16x16xf32>, vector<16x16xf32>, vector<16x16xf32> -> vector<64x16xf32>
    %62 = arith.truncf %61 : vector<64x16xf32> to vector<64x16xbf16>
    %c0_14 = arith.constant 0 : index
    %c0_15 = arith.constant 0 : index
    %63 = vector.load %arg2[%c0_14, %c0_15] : memref<128x64xbf16, #tpu.memory_space<vmem>>, vector<128x64xbf16>
    %cst_16 = arith.constant dense<0.000000e+00> : vector<128x16xf32>
    %64 = tpu.matmul %63, %62, %cst_16 {dimension_numbers = #tpu.dot_dimension_numbers<[1], [0], [0], [1], [0, 0, 1, 1], [], []>} : vector<128x64xbf16>, vector<64x16xbf16>, vector<128x16xf32> -> vector<128x16xf32>
    %c0_17 = arith.constant 0 : index
    %c0_18 = arith.constant 0 : index
    %65 = vector.load %arg5[%c0_17, %c0_18] : memref<128x1xf32, #tpu.memory_space<vmem>>, vector<128x1xf32>
    %66 = vector.broadcast %65 : vector<128x1xf32> to vector<128x16xf32>
    %67 = arith.mulf %64, %66 : vector<128x16xf32>
    %c0_19 = arith.constant 0 : index
    %c0_20 = arith.constant 0 : index
    %68 = vector.load %arg6[%c0_19, %c0_20] : memref<128x1xf32, #tpu.memory_space<vmem>>, vector<128x1xf32>
    %69 = vector.broadcast %68 : vector<128x1xf32> to vector<128x16xf32>
    %70 = arith.addf %67, %69 : vector<128x16xf32>
    %cst_21 = arith.constant 0.000000e+00 : f32
    %71 = vector.broadcast %cst_21 : f32 to vector<128x16xf32>
    %72 = arith.maximumf %70, %71 : vector<128x16xf32>
    %cst_22 = arith.constant dense<0.000000e+00> : vector<128xf32>
    %73 = vector.multi_reduction <add>, %72, %cst_22 [1] : vector<128x16xf32> to vector<128xf32>
    %74 = vector.shape_cast %73 : vector<128xf32> to vector<128x1xf32>
    %cst_23 = arith.constant 1.600000e+01 : f32
    %75 = vector.broadcast %cst_23 : f32 to vector<128x1xf32>
    %76 = arith.divf %74, %75 : vector<128x1xf32>
    %c0_24 = arith.constant 0 : index
    %c0_25 = arith.constant 0 : index
    %77 = vector.load %arg7[%c0_24, %c0_25] : memref<128x8xf32, #tpu.memory_space<vmem>>, vector<128x8xf32>
    %78 = vector.broadcast %76 : vector<128x1xf32> to vector<128x8xf32>
    %79 = arith.mulf %77, %78 : vector<128x8xf32>
    %cst_26 = arith.constant dense<0.000000e+00> : vector<8xf32>
    %80 = vector.multi_reduction <add>, %79, %cst_26 [0] : vector<128x8xf32> to vector<8xf32>
    %81 = vector.shape_cast %80 : vector<8xf32> to vector<1x8xf32>
    %cst_27 = arith.constant 0.000000e+00 : f32
    %82 = vector.broadcast %cst_27 : f32 to vector<1x8xf32>
    %83 = arith.maximumf %81, %82 : vector<1x8xf32>
    %c0_28 = arith.constant 0 : index
    %c0_29 = arith.constant 0 : index
    %84 = vector.load %arg8[%c0_28, %c0_29] : memref<128x8xf32, #tpu.memory_space<vmem>>, vector<128x8xf32>
    %85 = vector.broadcast %83 : vector<1x8xf32> to vector<128x8xf32>
    %86 = arith.mulf %84, %85 : vector<128x8xf32>
    %cst_30 = arith.constant dense<0.000000e+00> : vector<128xf32>
    %87 = vector.multi_reduction <add>, %86, %cst_30 [1] : vector<128x8xf32> to vector<128xf32>
    %88 = vector.shape_cast %87 : vector<128xf32> to vector<128x1xf32>
    %cst_31 = arith.constant 0.000000e+00 : f32
    %89 = vector.broadcast %cst_31 : f32 to vector<128x1xf32>
    %90 = arith.subf %89, %88 : vector<128x1xf32>
    %91 = math.exp %90 : vector<128x1xf32>
    %cst_32 = arith.constant 1.000000e+00 : f32
    %92 = vector.broadcast %cst_32 : f32 to vector<128x1xf32>
    %93 = arith.addf %92, %91 : vector<128x1xf32>
    %94 = tpu.reciprocal %93 {approx = true} : vector<128x1xf32> -> vector<128x1xf32>
    %95 = vector.broadcast %94 : vector<128x1xf32> to vector<128x16xf32>
    %96 = arith.mulf %72, %95 : vector<128x16xf32>
    %c0_33 = arith.constant 0 : index
    %c0_34 = arith.constant 0 : index
    %97 = vector.load %arg9[%c0_33, %c0_34] : memref<16x128xbf16, #tpu.memory_space<vmem>>, vector<16x128xbf16>
    %98 = arith.truncf %96 : vector<128x16xf32> to vector<128x16xbf16>
    %cst_35 = arith.constant dense<0.000000e+00> : vector<16x16xf32>
    %99 = tpu.matmul %97, %98, %cst_35 {dimension_numbers = #tpu.dot_dimension_numbers<[1], [0], [0], [1], [0, 0, 1, 1], [], []>} : vector<16x128xbf16>, vector<128x16xbf16>, vector<16x16xf32> -> vector<16x16xf32>
    %c0_36 = arith.constant 0 : index
    %c0_37 = arith.constant 0 : index
    %100 = vector.load %arg10[%c0_36, %c0_37] : memref<16x1xf32, #tpu.memory_space<vmem>>, vector<16x1xf32>
    %101 = vector.broadcast %100 : vector<16x1xf32> to vector<16x16xf32>
    %102 = arith.mulf %99, %101 : vector<16x16xf32>
    %c0_38 = arith.constant 0 : index
    %c0_39 = arith.constant 0 : index
    %103 = vector.load %arg11[%c0_38, %c0_39] : memref<16x1xf32, #tpu.memory_space<vmem>>, vector<16x1xf32>
    %104 = vector.broadcast %103 : vector<16x1xf32> to vector<16x16xf32>
    %105 = arith.addf %102, %104 : vector<16x16xf32>
    %cst_40 = arith.constant 0.000000e+00 : f32
    %106 = vector.broadcast %cst_40 : f32 to vector<16x16xf32>
    %107 = arith.maximumf %105, %106 : vector<16x16xf32>
    %c0_41 = arith.constant 0 : index
    %c3_42 = arith.constant 3 : index
    %108 = vector.load %arg16[%c0_41, %c3_42] : memref<16x22xf32, #tpu.memory_space<vmem>>, vector<16x16xf32>
    tpu.vector_store %arg16[%c0_41, %c3_42], %107 {strides = array<i32>} : memref<16x22xf32, #tpu.memory_space<vmem>>, vector<16x16xf32>,
    %c0_43 = arith.constant 0 : index
    %c0_44 = arith.constant 0 : index
    %109 = vector.load %arg16[%c0_43, %c0_44] : memref<16x22xf32, #tpu.memory_space<vmem>>, vector<16x22xf32>
    %c0_45 = arith.constant 0 : index
    %c0_46 = arith.constant 0 : index
    %110 = vector.load %arg12[%c0_45, %c0_46] : memref<16x7xf32, #tpu.memory_space<vmem>>, vector<16x7xf32>
    %111 = vector.extract_strided_slice %109 {offsets = [0, 0], sizes = [16, 16], strides = [1, 1]} : vector<16x22xf32> to vector<16x16xf32>
    %112 = vector.extract_strided_slice %110 {offsets = [0, 0], sizes = [16, 1], strides = [1, 1]} : vector<16x7xf32> to vector<16x1xf32>
    %113 = vector.broadcast %112 : vector<16x1xf32> to vector<16x16xf32>
    %114 = arith.mulf %111, %113 : vector<16x16xf32>
    %115 = vector.extract_strided_slice %109 {offsets = [0, 1], sizes = [16, 16], strides = [1, 1]} : vector<16x22xf32> to vector<16x16xf32>
    %116 = vector.extract_strided_slice %110 {offsets = [0, 1], sizes = [16, 1], strides = [1, 1]} : vector<16x7xf32> to vector<16x1xf32>
    %117 = vector.broadcast %116 : vector<16x1xf32> to vector<16x16xf32>
    %118 = arith.mulf %115, %117 : vector<16x16xf32>
    %119 = arith.addf %114, %118 : vector<16x16xf32>
    %120 = vector.extract_strided_slice %109 {offsets = [0, 2], sizes = [16, 16], strides = [1, 1]} : vector<16x22xf32> to vector<16x16xf32>
    %121 = vector.extract_strided_slice %110 {offsets = [0, 2], sizes = [16, 1], strides = [1, 1]} : vector<16x7xf32> to vector<16x1xf32>
    %122 = vector.broadcast %121 : vector<16x1xf32> to vector<16x16xf32>
    %123 = arith.mulf %120, %122 : vector<16x16xf32>
    %124 = arith.addf %119, %123 : vector<16x16xf32>
    %125 = vector.extract_strided_slice %109 {offsets = [0, 3], sizes = [16, 16], strides = [1, 1]} : vector<16x22xf32> to vector<16x16xf32>
    %126 = vector.extract_strided_slice %110 {offsets = [0, 3], sizes = [16, 1], strides = [1, 1]} : vector<16x7xf32> to vector<16x1xf32>
    %127 = vector.broadcast %126 : vector<16x1xf32> to vector<16x16xf32>
    %128 = arith.mulf %125, %127 : vector<16x16xf32>
    %129 = arith.addf %124, %128 : vector<16x16xf32>
    %130 = vector.extract_strided_slice %109 {offsets = [0, 4], sizes = [16, 16], strides = [1, 1]} : vector<16x22xf32> to vector<16x16xf32>
    %131 = vector.extract_strided_slice %110 {offsets = [0, 4], sizes = [16, 1], strides = [1, 1]} : vector<16x7xf32> to vector<16x1xf32>
    %132 = vector.broadcast %131 : vector<16x1xf32> to vector<16x16xf32>
    %133 = arith.mulf %130, %132 : vector<16x16xf32>
    %134 = arith.addf %129, %133 : vector<16x16xf32>
    %135 = vector.extract_strided_slice %109 {offsets = [0, 5], sizes = [16, 16], strides = [1, 1]} : vector<16x22xf32> to vector<16x16xf32>
    %136 = vector.extract_strided_slice %110 {offsets = [0, 5], sizes = [16, 1], strides = [1, 1]} : vector<16x7xf32> to vector<16x1xf32>
    %137 = vector.broadcast %136 : vector<16x1xf32> to vector<16x16xf32>
    %138 = arith.mulf %135, %137 : vector<16x16xf32>
    %139 = arith.addf %134, %138 : vector<16x16xf32>
    %140 = vector.extract_strided_slice %109 {offsets = [0, 6], sizes = [16, 16], strides = [1, 1]} : vector<16x22xf32> to vector<16x16xf32>
    %141 = vector.extract_strided_slice %110 {offsets = [0, 6], sizes = [16, 1], strides = [1, 1]} : vector<16x7xf32> to vector<16x1xf32>
    %142 = vector.broadcast %141 : vector<16x1xf32> to vector<16x16xf32>
    %143 = arith.mulf %140, %142 : vector<16x16xf32>
    %144 = arith.addf %139, %143 : vector<16x16xf32>
    %c0_47 = arith.constant 0 : index
    %c0_48 = arith.constant 0 : index
    %145 = vector.load %arg13[%c0_47, %c0_48] : memref<16x1xf32, #tpu.memory_space<vmem>>, vector<16x1xf32>
    %146 = vector.broadcast %145 : vector<16x1xf32> to vector<16x16xf32>
    %147 = arith.mulf %144, %146 : vector<16x16xf32>
    %c0_49 = arith.constant 0 : index
    %c0_50 = arith.constant 0 : index
    %148 = vector.load %arg14[%c0_49, %c0_50] : memref<16x1xf32, #tpu.memory_space<vmem>>, vector<16x1xf32>
    %149 = vector.broadcast %148 : vector<16x1xf32> to vector<16x16xf32>
    %150 = arith.addf %147, %149 : vector<16x16xf32>
    %cst_51 = arith.constant 0.000000e+00 : f32
    %151 = vector.broadcast %cst_51 : f32 to vector<16x16xf32>
    %152 = arith.subf %151, %150 : vector<16x16xf32>
    %153 = math.exp %152 : vector<16x16xf32>
    %cst_52 = arith.constant 1.000000e+00 : f32
    %154 = vector.broadcast %cst_52 : f32 to vector<16x16xf32>
    %155 = arith.addf %154, %153 : vector<16x16xf32>
    %156 = tpu.reciprocal %155 {approx = true} : vector<16x16xf32> -> vector<16x16xf32>
    %157 = arith.mulf %107, %156 : vector<16x16xf32>
    %158 = arith.addf %157, %1 : vector<16x16xf32>
    %cst_53 = arith.constant 0.000000e+00 : f32
    %159 = vector.broadcast %cst_53 : f32 to vector<16x16xf32>
    %160 = arith.maximumf %158, %159 : vector<16x16xf32>
    %c0_54 = arith.constant 0 : index
    %c0_55 = arith.constant 0 : index
    %c0_56 = arith.constant 0 : index
    %161 = vector.load %arg15[%c0_54, %c0_55, %c0_56] : memref<1x16x16xf32, #tpu.memory_space<vmem>>, vector<1x16x16xf32>
    %162 = vector.shape_cast %161 : vector<1x16x16xf32> to vector<16x16xf32>
    %163 = vector.shape_cast %160 : vector<16x16xf32> to vector<1x16x16xf32>
    tpu.vector_store %arg15[%c0_54, %c0_55, %c0_56], %163 {strides = array<i32>} : memref<1x16x16xf32, #tpu.memory_space<vmem>>, vector<1x16x16xf32>,
    return
  }
  func.func @transform_0(%arg0: i32) -> (i32, i32, i32) {
    %c0_i32 = arith.constant 0 : i32
    %c0_i32_0 = arith.constant 0 : i32
    %c0_i32_1 = arith.constant 0 : i32
    return %arg0, %c0_i32, %c0_i32_0 : i32, i32, i32
  }
  func.func @transform_1(%arg0: i32) -> (i32, i32) {
    %c0_i32 = arith.constant 0 : i32
    %c0_i32_0 = arith.constant 0 : i32
    %c0_i32_1 = arith.constant 0 : i32
    return %c0_i32, %c0_i32_0 : i32, i32
  }
  func.func @transform_2(%arg0: i32) -> (i32, i32) {
    %c0_i32 = arith.constant 0 : i32
    %c0_i32_0 = arith.constant 0 : i32
    %c0_i32_1 = arith.constant 0 : i32
    return %c0_i32, %c0_i32_0 : i32, i32
  }
  func.func @transform_3(%arg0: i32) -> (i32, i32) {
    %c0_i32 = arith.constant 0 : i32
    %c0_i32_0 = arith.constant 0 : i32
    %c0_i32_1 = arith.constant 0 : i32
    return %c0_i32, %c0_i32_0 : i32, i32
  }
  func.func @transform_4(%arg0: i32) -> (i32, i32) {
    %c0_i32 = arith.constant 0 : i32
    %c0_i32_0 = arith.constant 0 : i32
    %c0_i32_1 = arith.constant 0 : i32
    return %c0_i32, %c0_i32_0 : i32, i32
  }
  func.func @transform_5(%arg0: i32) -> (i32, i32) {
    %c0_i32 = arith.constant 0 : i32
    %c0_i32_0 = arith.constant 0 : i32
    %c0_i32_1 = arith.constant 0 : i32
    return %c0_i32, %c0_i32_0 : i32, i32
  }
  func.func @transform_6(%arg0: i32) -> (i32, i32) {
    %c0_i32 = arith.constant 0 : i32
    %c0_i32_0 = arith.constant 0 : i32
    %c0_i32_1 = arith.constant 0 : i32
    return %c0_i32, %c0_i32_0 : i32, i32
  }
  func.func @transform_7(%arg0: i32) -> (i32, i32) {
    %c0_i32 = arith.constant 0 : i32
    %c0_i32_0 = arith.constant 0 : i32
    %c0_i32_1 = arith.constant 0 : i32
    return %c0_i32, %c0_i32_0 : i32, i32
  }
  func.func @transform_8(%arg0: i32) -> (i32, i32) {
    %c0_i32 = arith.constant 0 : i32
    %c0_i32_0 = arith.constant 0 : i32
    %c0_i32_1 = arith.constant 0 : i32
    return %c0_i32, %c0_i32_0 : i32, i32
  }
  func.func @transform_9(%arg0: i32) -> (i32, i32) {
    %c0_i32 = arith.constant 0 : i32
    %c0_i32_0 = arith.constant 0 : i32
    %c0_i32_1 = arith.constant 0 : i32
    return %c0_i32, %c0_i32_0 : i32, i32
  }
  func.func @transform_10(%arg0: i32) -> (i32, i32) {
    %c0_i32 = arith.constant 0 : i32
    %c0_i32_0 = arith.constant 0 : i32
    %c0_i32_1 = arith.constant 0 : i32
    return %c0_i32, %c0_i32_0 : i32, i32
  }
  func.func @transform_11(%arg0: i32) -> (i32, i32) {
    %c0_i32 = arith.constant 0 : i32
    %c0_i32_0 = arith.constant 0 : i32
    %c0_i32_1 = arith.constant 0 : i32
    return %c0_i32, %c0_i32_0 : i32, i32
  }
  func.func @transform_12(%arg0: i32) -> (i32, i32) {
    %c0_i32 = arith.constant 0 : i32
    %c0_i32_0 = arith.constant 0 : i32
    %c0_i32_1 = arith.constant 0 : i32
    return %c0_i32, %c0_i32_0 : i32, i32
  }
  func.func @transform_13(%arg0: i32) -> (i32, i32) {
    %c0_i32 = arith.constant 0 : i32
    %c0_i32_0 = arith.constant 0 : i32
    %c0_i32_1 = arith.constant 0 : i32
    return %c0_i32, %c0_i32_0 : i32, i32
  }
  func.func @transform_14(%arg0: i32) -> (i32, i32, i32) {
    %c0_i32 = arith.constant 0 : i32
    %c0_i32_0 = arith.constant 0 : i32
    %c0_i32_1 = arith.constant 0 : i32
    return %arg0, %c0_i32, %c0_i32_0 : i32, i32, i32
  }
}

</mosaic_0001>

<llo_original>
// kernel: my_icb_forward.1
$region0: #{my_icb_forward.1}
  #allocation0 [shape = 'u32[]', space=smem, size = 0x4, offset = 0x4, fixed_abs, tag = 'smem constant byte address 0x4 - core index']
  #allocation1 [shape = 'u32[72,128]{1,0:T(1,128)}', space=vmem, size = 0x9000, scoped, tag = 'internal scratch']
  #allocation2 [shape = 'f32[16,22]{1,0:T(8,128)}', space=vmem, size = 0x2000, scoped, tag = 'scratch operand']
  %s0 = inlined_call_operand.vmem [shape: f32[2,16,16], index: 0, kind: input, shape index: {}]
  %s1 = inlined_call_operand.vmem [shape: bf16[128,64], index: 1, kind: input, shape index: {}]
  %s2 = inlined_call_operand.vmem [shape: f32[16,3], index: 2, kind: input, shape index: {}]
  %s3 = inlined_call_operand.vmem [shape: f32[16,5], index: 3, kind: input, shape index: {}]
  %s4 = inlined_call_operand.vmem [shape: f32[128,1], index: 4, kind: input, shape index: {}]
  %s5 = inlined_call_operand.vmem [shape: f32[128,1], index: 5, kind: input, shape index: {}]
  %s6 = inlined_call_operand.vmem [shape: f32[128,8], index: 6, kind: input, shape index: {}]
  %s7 = inlined_call_operand.vmem [shape: f32[128,8], index: 7, kind: input, shape index: {}]
  %s8 = inlined_call_operand.vmem [shape: bf16[16,128], index: 8, kind: input, shape index: {}]
  %s9 = inlined_call_operand.vmem [shape: f32[16,1], index: 9, kind: input, shape index: {}]
  %s10 = inlined_call_operand.vmem [shape: f32[16,1], index: 10, kind: input, shape index: {}]
  %s11 = inlined_call_operand.vmem [shape: f32[16,7], index: 11, kind: input, shape index: {}]
  %s12 = inlined_call_operand.vmem [shape: f32[16,1], index: 12, kind: input, shape index: {}]
  %s13 = inlined_call_operand.vmem [shape: f32[16,1], index: 13, kind: input, shape index: {}]
  %s14 = inlined_call_operand.hbm [shape: f32[2,16,16], index: 14, kind: output, shape index: {}]
  %s15 = sld [smem:[#allocation0]]
  $region89: #{my_icb_forward.1} parent=0
    _
  %s17 = ssub.s32 1, %s15
  %s18 = scalar_select 0, %s17, %s15
  $region1: #{my_icb_forward.1} parent=0
    #allocation3 [shape = 'u8[16384]{0}', space=vmem, size = 0x4000, scoped, tag = 'output window, operand 0']
    #allocation4 [shape = 's32[2]{0}', space=sflag, size = 0x8, scoped, tag = 'scoped memory for my_icb_forward.1']
    %19 = vsyncpa [#allocation4], 0
    %s20 = scalar_lea.sflag [#allocation4], 1
    %21 = vsyncpa %s20, 0
    loop: start=0, step=1, limit=4
    $region2: #{my_icb_forward.1} parent=1 // loop_pre_header
      _
    $region3: #{my_icb_forward.1} parent=1 // loop_header
      %s23 = sphi 0, %s27
      %p24 = scmp.ge.s32.totalorder %s23, 4
      %s33 = sphi 0, %s35
      %s36 = sphi 0, %s33
      %s37 = sphi 0, %s36
      %s53 = sphi 0, %s37
      %s57 = sphi 0, %s57
      %s59 = sphi 0, %s57
      %s60 = sphi 0, %s59
      %s74 = sphi 0, %s60
      %s78 = sphi 0, %s78
      %s80 = sphi 0, %s78
      %s81 = sphi 0, %s80
      %s95 = sphi 0, %s81
      %s99 = sphi 0, %s99
      %s101 = sphi 0, %s99
      %s102 = sphi 0, %s101
      %s116 = sphi 0, %s102
      %s120 = sphi 0, %s120
      %s122 = sphi 0, %s120
      %s123 = sphi 0, %s122
      %s137 = sphi 0, %s123
      %s141 = sphi 0, %s141
      %s143 = sphi 0, %s141
      %s144 = sphi 0, %s143
      %s158 = sphi 0, %s144
      %s162 = sphi 0, %s162
      %s164 = sphi 0, %s162
      %s165 = sphi 0, %s164
      %s179 = sphi 0, %s165
      %s183 = sphi 0, %s183
      %s185 = sphi 0, %s183
      %s186 = sphi 0, %s185
      %s200 = sphi 0, %s186
      %s204 = sphi 0, %s204
      %s206 = sphi 0, %s204
      %s207 = sphi 0, %s206
      %s221 = sphi 0, %s207
      %s225 = sphi 0, %s225
      %s227 = sphi 0, %s225
      %s228 = sphi 0, %s227
      %s242 = sphi 0, %s228
      %s246 = sphi 0, %s246
      %s248 = sphi 0, %s246
      %s249 = sphi 0, %s248
      %s263 = sphi 0, %s249
      %s267 = sphi 0, %s267
      %s269 = sphi 0, %s267
      %s270 = sphi 0, %s269
      %s284 = sphi 0, %s270
      %s288 = sphi 0, %s288
      %s290 = sphi 0, %s288
      %s291 = sphi 0, %s290
      %s305 = sphi 0, %s291
      %s309 = sphi 0, %s309
      %s311 = sphi 0, %s309
      %s312 = sphi 0, %s311
      %s326 = sphi 0, %s312
      %s332 = sphi 0, %s334
      %s335 = sphi 0, %s332
      %s336 = sphi 0, %s335
      %s352 = sphi 0, %s336
    $region4: #{my_icb_forward.1} parent=1 // loop_header_branch
      %26 = sbr.rel (%p24) target = $region8
    $region5: #{my_icb_forward.1} parent=1 // loop_body
      %s28 = ssub.s32 %s23, 1
      %s29 = ssub.s32 %s23, 2
      %s30 = sadd.s32 %s23, 1
      %s31 = ssub.s32 %s23, %s30
      %p32 = scmp.eq.s32.totalorder %s31, 0
      %s34 = sadd.s32 %s33, 1
      %s35 = scalar_select %p32, %s33, %s34
      %p38 = pneg %p32
      %p39 = scmp.eq.s32.totalorder %s23, 1
      %p40 = por %p38, %p39
      %p41 = scmp.ne.s32.totalorder %s33, %s36
      %p42 = scmp.eq.s32.totalorder %s23, 0
      %p43 = por %p41, %p42
      %p44 = scmp.ne.s32.totalorder %s33, %s36
      %p45 = scmp.eq.s32.totalorder %s28, 1
      %p46 = por %p44, %p45
      %p47 = scmp.ne.s32.totalorder %s36, %s37
      %p48 = scmp.eq.s32.totalorder %s28, 0
      %p49 = por %p47, %p48
      %p50 = scmp.ne.s32.totalorder %s36, %s37
      %p51 = scmp.eq.s32.totalorder %s29, 1
      %p52 = por %p50, %p51
      %p54 = scmp.ne.s32.totalorder %s37, %s53
      %p55 = scmp.eq.s32.totalorder %s29, 0
      %p56 = por %p54, %p55
      %s58 = sadd.s32 %s57, 1
      %p61 = scmp.eq.s32.totalorder %s23, 1
      %p62 = scmp.ne.s32.totalorder %s57, %s59
      %p63 = scmp.eq.s32.totalorder %s23, 0
      %p64 = por %p62, %p63
      %p65 = scmp.ne.s32.totalorder %s57, %s59
      %p66 = scmp.eq.s32.totalorder %s28, 1
      %p67 = por %p65, %p66
      %p68 = scmp.ne.s32.totalorder %s59, %s60
      %p69 = scmp.eq.s32.totalorder %s28, 0
      %p70 = por %p68, %p69
      %p71 = scmp.ne.s32.totalorder %s59, %s60
      %p72 = scmp.eq.s32.totalorder %s29, 1
      %p73 = por %p71, %p72
      %p75 = scmp.ne.s32.totalorder %s60, %s74
      %p76 = scmp.eq.s32.totalorder %s29, 0
      %p77 = por %p75, %p76
      %s79 = sadd.s32 %s78, 1
      %p82 = scmp.eq.s32.totalorder %s23, 1
      %p83 = scmp.ne.s32.totalorder %s78, %s80
      %p84 = scmp.eq.s32.totalorder %s23, 0
      %p85 = por %p83, %p84
      %p86 = scmp.ne.s32.totalorder %s78, %s80
      %p87 = scmp.eq.s32.totalorder %s28, 1
      %p88 = por %p86, %p87
      %p89 = scmp.ne.s32.totalorder %s80, %s81
      %p90 = scmp.eq.s32.totalorder %s28, 0
      %p91 = por %p89, %p90
      %p92 = scmp.ne.s32.totalorder %s80, %s81
      %p93 = scmp.eq.s32.totalorder %s29, 1
      %p94 = por %p92, %p93
      %p96 = scmp.ne.s32.totalorder %s81, %s95
      %p97 = scmp.eq.s32.totalorder %s29, 0
      %p98 = por %p96, %p97
      %s100 = sadd.s32 %s99, 1
      %p103 = scmp.eq.s32.totalorder %s23, 1
      %p104 = scmp.ne.s32.totalorder %s99, %s101
      %p105 = scmp.eq.s32.totalorder %s23, 0
      %p106 = por %p104, %p105
      %p107 = scmp.ne.s32.totalorder %s99, %s101
      %p108 = scmp.eq.s32.totalorder %s28, 1
      %p109 = por %p107, %p108
      %p110 = scmp.ne.s32.totalorder %s101, %s102
      %p111 = scmp.eq.s32.totalorder %s28, 0
      %p112 = por %p110, %p111
      %p113 = scmp.ne.s32.totalorder %s101, %s102
      %p114 = scmp.eq.s32.totalorder %s29, 1
      %p115 = por %p113, %p114
      %p117 = scmp.ne.s32.totalorder %s102, %s116
      %p118 = scmp.eq.s32.totalorder %s29, 0
      %p119 = por %p117, %p118
      %s121 = sadd.s32 %s120, 1
      %p124 = scmp.eq.s32.totalorder %s23, 1
      %p125 = scmp.ne.s32.totalorder %s120, %s122
      %p126 = scmp.eq.s32.totalorder %s23, 0
      %p127 = por %p125, %p126
      %p128 = scmp.ne.s32.totalorder %s120, %s122
      %p129 = scmp.eq.s32.totalorder %s28, 1
      %p130 = por %p128, %p129
      %p131 = scmp.ne.s32.totalorder %s122, %s123
      %p132 = scmp.eq.s32.totalorder %s28, 0
      %p133 = por %p131, %p132
      %p134 = scmp.ne.s32.totalorder %s122, %s123
      %p135 = scmp.eq.s32.totalorder %s29, 1
      %p136 = por %p134, %p135
      %p138 = scmp.ne.s32.totalorder %s123, %s137
      %p139 = scmp.eq.s32.totalorder %s29, 0
      %p140 = por %p138, %p139
      %s142 = sadd.s32 %s141, 1
      %p145 = scmp.eq.s32.totalorder %s23, 1
      %p146 = scmp.ne.s32.totalorder %s141, %s143
      %p147 = scmp.eq.s32.totalorder %s23, 0
      %p148 = por %p146, %p147
      %p149 = scmp.ne.s32.totalorder %s141, %s143
      %p150 = scmp.eq.s32.totalorder %s28, 1
      %p151 = por %p149, %p150
      %p152 = scmp.ne.s32.totalorder %s143, %s144
      %p153 = scmp.eq.s32.totalorder %s28, 0
      %p154 = por %p152, %p153
      %p155 = scmp.ne.s32.totalorder %s143, %s144
      %p156 = scmp.eq.s32.totalorder %s29, 1
      %p157 = por %p155, %p156
      %p159 = scmp.ne.s32.totalorder %s144, %s158
      %p160 = scmp.eq.s32.totalorder %s29, 0
      %p161 = por %p159, %p160
      %s163 = sadd.s32 %s162, 1
      %p166 = scmp.eq.s32.totalorder %s23, 1
      %p167 = scmp.ne.s32.totalorder %s162, %s164
      %p168 = scmp.eq.s32.totalorder %s23, 0
      %p169 = por %p167, %p168
      %p170 = scmp.ne.s32.totalorder %s162, %s164
      %p171 = scmp.eq.s32.totalorder %s28, 1
      %p172 = por %p170, %p171
      %p173 = scmp.ne.s32.totalorder %s164, %s165
      %p174 = scmp.eq.s32.totalorder %s28, 0
      %p175 = por %p173, %p174
      %p176 = scmp.ne.s32.totalorder %s164, %s165
      %p177 = scmp.eq.s32.totalorder %s29, 1
      %p178 = por %p176, %p177
      %p180 = scmp.ne.s32.totalorder %s165, %s179
      %p181 = scmp.eq.s32.totalorder %s29, 0
      %p182 = por %p180, %p181
      %s184 = sadd.s32 %s183, 1
      %p187 = scmp.eq.s32.totalorder %s23, 1
      %p188 = scmp.ne.s32.totalorder %s183, %s185
      %p189 = scmp.eq.s32.totalorder %s23, 0
      %p190 = por %p188, %p189
      %p191 = scmp.ne.s32.totalorder %s183, %s185
      %p192 = scmp.eq.s32.totalorder %s28, 1
      %p193 = por %p191, %p192
      %p194 = scmp.ne.s32.totalorder %s185, %s186
      %p195 = scmp.eq.s32.totalorder %s28, 0
      %p196 = por %p194, %p195
      %p197 = scmp.ne.s32.totalorder %s185, %s186
      %p198 = scmp.eq.s32.totalorder %s29, 1
      %p199 = por %p197, %p198
      %p201 = scmp.ne.s32.totalorder %s186, %s200
      %p202 = scmp.eq.s32.totalorder %s29, 0
      %p203 = por %p201, %p202
      %s205 = sadd.s32 %s204, 1
      %p208 = scmp.eq.s32.totalorder %s23, 1
      %p209 = scmp.ne.s32.totalorder %s204, %s206
      %p210 = scmp.eq.s32.totalorder %s23, 0
      %p211 = por %p209, %p210
      %p212 = scmp.ne.s32.totalorder %s204, %s206
      %p213 = scmp.eq.s32.totalorder %s28, 1
      %p214 = por %p212, %p213
      %p215 = scmp.ne.s32.totalorder %s206, %s207
      %p216 = scmp.eq.s32.totalorder %s28, 0
      %p217 = por %p215, %p216
      %p218 = scmp.ne.s32.totalorder %s206, %s207
      %p219 = scmp.eq.s32.totalorder %s29, 1
      %p220 = por %p218, %p219
      %p222 = scmp.ne.s32.totalorder %s207, %s221
      %p223 = scmp.eq.s32.totalorder %s29, 0
      %p224 = por %p222, %p223
      %s226 = sadd.s32 %s225, 1
      %p229 = scmp.eq.s32.totalorder %s23, 1
      %p230 = scmp.ne.s32.totalorder %s225, %s227
      %p231 = scmp.eq.s32.totalorder %s23, 0
      %p232 = por %p230, %p231
      %p233 = scmp.ne.s32.totalorder %s225, %s227
      %p234 = scmp.eq.s32.totalorder %s28, 1
      %p235 = por %p233, %p234
      %p236 = scmp.ne.s32.totalorder %s227, %s228
      %p237 = scmp.eq.s32.totalorder %s28, 0
      %p238 = por %p236, %p237
      %p239 = scmp.ne.s32.totalorder %s227, %s228
      %p240 = scmp.eq.s32.totalorder %s29, 1
      %p241 = por %p239, %p240
      %p243 = scmp.ne.s32.totalorder %s228, %s242
      %p244 = scmp.eq.s32.totalorder %s29, 0
      %p245 = por %p243, %p244
      %s247 = sadd.s32 %s246, 1
      %p250 = scmp.eq.s32.totalorder %s23, 1
      %p251 = scmp.ne.s32.totalorder %s246, %s248
      %p252 = scmp.eq.s32.totalorder %s23, 0
      %p253 = por %p251, %p252
      %p254 = scmp.ne.s32.totalorder %s246, %s248
      %p255 = scmp.eq.s32.totalorder %s28, 1
      %p256 = por %p254, %p255
      %p257 = scmp.ne.s32.totalorder %s248, %s249
      %p258 = scmp.eq.s32.totalorder %s28, 0
      %p259 = por %p257, %p258
      %p260 = scmp.ne.s32.totalorder %s248, %s249
      %p261 = scmp.eq.s32.totalorder %s29, 1
      %p262 = por %p260, %p261
      %p264 = scmp.ne.s32.totalorder %s249, %s263
      %p265 = scmp.eq.s32.totalorder %s29, 0
      %p266 = por %p264, %p265
      %s268 = sadd.s32 %s267, 1
      %p271 = scmp.eq.s32.totalorder %s23, 1
      %p272 = scmp.ne.s32.totalorder %s267, %s269
      %p273 = scmp.eq.s32.totalorder %s23, 0
      %p274 = por %p272, %p273
      %p275 = scmp.ne.s32.totalorder %s267, %s269
      %p276 = scmp.eq.s32.totalorder %s28, 1
      %p277 = por %p275, %p276
      %p278 = scmp.ne.s32.totalorder %s269, %s270
      %p279 = scmp.eq.s32.totalorder %s28, 0
      %p280 = por %p278, %p279
      %p281 = scmp.ne.s32.totalorder %s269, %s270
      %p282 = scmp.eq.s32.totalorder %s29, 1
      %p283 = por %p281, %p282
      %p285 = scmp.ne.s32.totalorder %s270, %s284
      %p286 = scmp.eq.s32.totalorder %s29, 0
      %p287 = por %p285, %p286
      %s289 = sadd.s32 %s288, 1
      %p292 = scmp.eq.s32.totalorder %s23, 1
      %p293 = scmp.ne.s32.totalorder %s288, %s290
      %p294 = scmp.eq.s32.totalorder %s23, 0
      %p295 = por %p293, %p294
      %p296 = scmp.ne.s32.totalorder %s288, %s290
      %p297 = scmp.eq.s32.totalorder %s28, 1
      %p298 = por %p296, %p297
      %p299 = scmp.ne.s32.totalorder %s290, %s291
      %p300 = scmp.eq.s32.totalorder %s28, 0
      %p301 = por %p299, %p300
      %p302 = scmp.ne.s32.totalorder %s290, %s291
      %p303 = scmp.eq.s32.totalorder %s29, 1
      %p304 = por %p302, %p303
      %p306 = scmp.ne.s32.totalorder %s291, %s305
      %p307 = scmp.eq.s32.totalorder %s29, 0
      %p308 = por %p306, %p307
      %s310 = sadd.s32 %s309, 1
      %p313 = scmp.eq.s32.totalorder %s23, 1
      %p314 = scmp.ne.s32.totalorder %s309, %s311
      %p315 = scmp.eq.s32.totalorder %s23, 0
      %p316 = por %p314, %p315
      %p317 = scmp.ne.s32.totalorder %s309, %s311
      %p318 = scmp.eq.s32.totalorder %s28, 1
      %p319 = por %p317, %p318
      %p320 = scmp.ne.s32.totalorder %s311, %s312
      %p321 = scmp.eq.s32.totalorder %s28, 0
      %p322 = por %p320, %p321
      %p323 = scmp.ne.s32.totalorder %s311, %s312
      %p324 = scmp.eq.s32.totalorder %s29, 1
      %p325 = por %p323, %p324
      %p327 = scmp.ne.s32.totalorder %s312, %s326
      %p328 = scmp.eq.s32.totalorder %s29, 0
      %p329 = por %p327, %p328
      %s330 = ssub.s32 %s23, %s30
      %p331 = scmp.eq.s32.totalorder %s330, 0
      %s333 = sadd.s32 %s332, 1
      %s334 = scalar_select %p331, %s332, %s333
      %p337 = pneg %p331
      %p338 = scmp.eq.s32.totalorder %s23, 1
      %p339 = por %p337, %p338
      %p340 = scmp.ne.s32.totalorder %s332, %s335
      %p341 = scmp.eq.s32.totalorder %s23, 0
      %p342 = por %p340, %p341
      %p343 = scmp.ne.s32.totalorder %s332, %s335
      %p344 = scmp.eq.s32.totalorder %s28, 1
      %p345 = por %p343, %p344
      %p346 = scmp.ne.s32.totalorder %s335, %s336
      %p347 = scmp.eq.s32.totalorder %s28, 0
      %p348 = por %p346, %p347
      %p349 = scmp.ne.s32.totalorder %s335, %s336
      %p350 = scmp.eq.s32.totalorder %s29, 1
      %p351 = por %p349, %p350
      %p353 = scmp.ne.s32.totalorder %s336, %s352
      %p354 = scmp.eq.s32.totalorder %s29, 0
      %p355 = por %p353, %p354
      %p356 = scmp.le.s32.totalorder 1, %s23
      %p357 = scmp.lt.s32.totalorder %s23, 3
      %p358 = pnand %p356, %p357
      %p359 = pneg %p358
      // Predicated region
      $region9: #{my_icb_forward.1} parent=5 // pred_check
        _
      $region10: #{my_icb_forward.1} parent=5 // pred_check_branch
        %361 = sbr.rel (%p358) target = $region12
      $region11: #{my_icb_forward.1} parent=5 // pred_region
        %s362 = ssub.s32 %s23, 1
        // Predicated region
        $region13: #{my_icb_forward.1} parent=11 // pred_check
          %p363 = pneg %p70
        $region14: #{my_icb_forward.1} parent=11 // pred_check_branch
          %365 = sbr.rel (%p363) target = $region16
        $region15: #{my_icb_forward.1} parent=11 // pred_region
          _
        $region16: #{my_icb_forward.1} parent=11 // pred_fallthru
          _
        // Predicated region
        $region17: #{my_icb_forward.1} parent=11 // pred_check
          %p366 = pneg %p91
        $region18: #{my_icb_forward.1} parent=11 // pred_check_branch
          %368 = sbr.rel (%p366) target = $region20
        $region19: #{my_icb_forward.1} parent=11 // pred_region
          _
        $region20: #{my_icb_forward.1} parent=11 // pred_fallthru
          _
        // Predicated region
        $region21: #{my_icb_forward.1} parent=11 // pred_check
          %p369 = pneg %p112
        $region22: #{my_icb_forward.1} parent=11 // pred_check_branch
          %371 = sbr.rel (%p369) target = $region24
        $region23: #{my_icb_forward.1} parent=11 // pred_region
          _
        $region24: #{my_icb_forward.1} parent=11 // pred_fallthru
          _
        // Predicated region
        $region25: #{my_icb_forward.1} parent=11 // pred_check
          %p372 = pneg %p133
        $region26: #{my_icb_forward.1} parent=11 // pred_check_branch
          %374 = sbr.rel (%p372) target = $region28
        $region27: #{my_icb_forward.1} parent=11 // pred_region
          _
        $region28: #{my_icb_forward.1} parent=11 // pred_fallthru
          _
        // Predicated region
        $region29: #{my_icb_forward.1} parent=11 // pred_check
          %p375 = pneg %p154
        $region30: #{my_icb_forward.1} parent=11 // pred_check_branch
          %377 = sbr.rel (%p375) target = $region32
        $region31: #{my_icb_forward.1} parent=11 // pred_region
          _
        $region32: #{my_icb_forward.1} parent=11 // pred_fallthru
          _
        // Predicated region
        $region33: #{my_icb_forward.1} parent=11 // pred_check
          %p378 = pneg %p175
        $region34: #{my_icb_forward.1} parent=11 // pred_check_branch
          %380 = sbr.rel (%p378) target = $region36
        $region35: #{my_icb_forward.1} parent=11 // pred_region
          _
        $region36: #{my_icb_forward.1} parent=11 // pred_fallthru
          _
        // Predicated region
        $region37: #{my_icb_forward.1} parent=11 // pred_check
          %p381 = pneg %p196
        $region38: #{my_icb_forward.1} parent=11 // pred_check_branch
          %383 = sbr.rel (%p381) target = $region40
        $region39: #{my_icb_forward.1} parent=11 // pred_region
          _
        $region40: #{my_icb_forward.1} parent=11 // pred_fallthru
          _
        // Predicated region
        $region41: #{my_icb_forward.1} parent=11 // pred_check
          %p384 = pneg %p217
        $region42: #{my_icb_forward.1} parent=11 // pred_check_branch
          %386 = sbr.rel (%p384) target = $region44
        $region43: #{my_icb_forward.1} parent=11 // pred_region
          _
        $region44: #{my_icb_forward.1} parent=11 // pred_fallthru
          _
        // Predicated region
        $region45: #{my_icb_forward.1} parent=11 // pred_check
          %p387 = pneg %p238
        $region46: #{my_icb_forward.1} parent=11 // pred_check_branch
          %389 = sbr.rel (%p387) target = $region48
        $region47: #{my_icb_forward.1} parent=11 // pred_region
          _
        $region48: #{my_icb_forward.1} parent=11 // pred_fallthru
          _
        // Predicated region
        $region49: #{my_icb_forward.1} parent=11 // pred_check
          %p390 = pneg %p259
        $region50: #{my_icb_forward.1} parent=11 // pred_check_branch
          %392 = sbr.rel (%p390) target = $region52
        $region51: #{my_icb_forward.1} parent=11 // pred_region
          _
        $region52: #{my_icb_forward.1} parent=11 // pred_fallthru
          _
        // Predicated region
        $region53: #{my_icb_forward.1} parent=11 // pred_check
          %p393 = pneg %p280
        $region54: #{my_icb_forward.1} parent=11 // pred_check_branch
          %395 = sbr.rel (%p393) target = $region56
        $region55: #{my_icb_forward.1} parent=11 // pred_region
          _
        $region56: #{my_icb_forward.1} parent=11 // pred_fallthru
          _
        // Predicated region
        $region57: #{my_icb_forward.1} parent=11 // pred_check
          %p396 = pneg %p301
        $region58: #{my_icb_forward.1} parent=11 // pred_check_branch
          %398 = sbr.rel (%p396) target = $region60
        $region59: #{my_icb_forward.1} parent=11 // pred_region
          _
        $region60: #{my_icb_forward.1} parent=11 // pred_fallthru
          _
        // Predicated region
        $region61: #{my_icb_forward.1} parent=11 // pred_check
          %p399 = pneg %p322
        $region62: #{my_icb_forward.1} parent=11 // pred_check_branch
          %401 = sbr.rel (%p399) target = $region64
        $region63: #{my_icb_forward.1} parent=11 // pred_region
          _
        $region64: #{my_icb_forward.1} parent=11 // pred_fallthru
          _
      $region12: #{my_icb_forward.1} parent=5 // pred_fallthru
        _
      %p402 = scmp.lt.s32.totalorder %s23, 2
      // Predicated region
      $region65: #{my_icb_forward.1} parent=5 // pred_check
        %p403 = pneg %p402
      $region66: #{my_icb_forward.1} parent=5 // pred_check_branch
        %405 = sbr.rel (%p403) target = $region68
      $region67: #{my_icb_forward.1} parent=5 // pred_region
        // Predicated region
        $region69: #{my_icb_forward.1} parent=67 // pred_check
          %p406 = pneg %p43
        $region70: #{my_icb_forward.1} parent=67 // pred_check_branch
          %408 = sbr.rel (%p406) target = $region72
        $region71: #{my_icb_forward.1} parent=67 // pred_region
          %p409 = scmp.lt.s32.totalorder %s23, 1
          %s410 = scalar_select %p409, %s23, 1
          %s411 = smul.addr %s410, 2
          %s412 = smul.addr %s411, 8
          %s413 = scalar_lea.vmem %s0, %s412
        $region72: #{my_icb_forward.1} parent=67 // pred_fallthru
          _
      $region68: #{my_icb_forward.1} parent=5 // pred_fallthru
        _
      %p414 = scmp.le.s32.totalorder 1, %s23
      %p415 = scmp.lt.s32.totalorder %s23, 3
      %p416 = pnand %p414, %p415
      %p417 = pneg %p416
      // Predicated region
      $region73: #{my_icb_forward.1} parent=5 // pred_check
        _
      $region74: #{my_icb_forward.1} parent=5 // pred_check_branch
        %419 = sbr.rel (%p416) target = $region76
      $region75: #{my_icb_forward.1} parent=5 // pred_region
        %s420 = ssub.s32 %s23, 1
        %p421 = scmp.lt.s32.totalorder %s28, 1
        %s422 = scalar_select %p421, %s28, 1
        %s423 = smul.addr %s422, 2
        %s424 = smul.addr %s423, 8
        %s425 = scalar_lea.vmem %s0, %s424
        %p426 = pneg %p49
        %p427 = pneg %p46
        %p428 = pneg %p70
        %p429 = pneg %p67
        %p430 = pneg %p91
        %p431 = pneg %p88
        %p432 = pneg %p112
        %p433 = pneg %p109
        %p434 = pneg %p133
        %p435 = pneg %p130
        %p436 = pneg %p154
        %p437 = pneg %p151
        %p438 = pneg %p175
        %p439 = pneg %p172
        %p440 = pneg %p196
        %p441 = pneg %p193
        %p442 = pneg %p217
        %p443 = pneg %p214
        %p444 = pneg %p238
        %p445 = pneg %p235
        %p446 = pneg %p259
        %p447 = pneg %p256
        %p448 = pneg %p280
        %p449 = pneg %p277
        %p450 = pneg %p301
        %p451 = pneg %p298
        %p452 = pneg %p322
        %p453 = pneg %p319
        %p454 = pneg %p348
        %p455 = pneg %p345
        %s456 = sand.u32 %s335, 1
        %s457 = scalar_lea.sflag [#allocation4], %s456
        %s458 = sand.u32 %s335, 1
        %s459 = smul.addr %s458, 16
        %s460 = scalar_lea.vmem [#allocation3], %s459
        %p461 = scmp.lt.s32.totalorder %s28, 1
        %s462 = scalar_select %p461, %s28, 1
        %s463 = smul.addr %s462, 2
        %s464 = smul.addr %s463, 8
        %s465 = scalar_lea.vmem %s0, %s464
        %v467 = vld [vmem:[%s465] sm:$0xff]
        %v468 = vld [vmem:[%s465 + $0x8] sm:$0xff]
        %vm469 = vcmask 23552
        %470 = vst.msk [vmem:[#allocation2] sm:$0xff] %vm469, 0.0
        %471 = vst.msk [vmem:[#allocation2 + $0x8] sm:$0xff] %vm469, 0.0
        %vm472 = vcmask 179352
        %473 = vst.msk [vmem:[#allocation2] sm:$0xff] %vm472, 0.0
        %474 = vst.msk [vmem:[#allocation2 + $0x8] sm:$0xff] %vm472, 0.0
        %477 = vrot.lane.b32.xlu0 %v467, 3
        %v478 = vpop.permute.xlu0 %477
        %479 = vrot.lane.b32.xlu0 %v468, 3
        %v480 = vpop.permute.xlu0 %479
        %vm483 = vcmask 154648
        %484 = vst.msk [vmem:[#allocation2] sm:$0xff] %vm483, %v478
        %485 = vst.msk [vmem:[#allocation2 + $0x8] sm:$0xff] %vm483, %v480
        %v486 = vld [vmem:[#allocation2] sm:$0xff]
        %v487 = vld [vmem:[#allocation2 + $0x8] sm:$0xff]
        %v488 = vld [vmem:[%s2] sm:$0xff]
        %v489 = vld [vmem:[%s2 + $0x8] sm:$0xff]
        %491 = vset.pattern.permute.xlu0 0
        %492 = vperm.xlu0 %491, %v488
        %v493 = vpop.permute.xlu0 %492
        %496 = vset.pattern.permute.xlu0 0
        %497 = vperm.xlu0 %496, %v489
        %v498 = vpop.permute.xlu0 %497
        %v500 = vmul.f32 %v486, %v493
        %v501 = vmul.f32 %v487, %v498
        %502 = vset.pattern.permute.xlu0 1
        %503 = vperm.xlu0 %502, %v488
        %v504 = vpop.permute.xlu0 %503
        %506 = vset.pattern.permute.xlu0 1
        %507 = vperm.xlu0 %506, %v489
        %v508 = vpop.permute.xlu0 %507
        %v510 = vmul.f32 %v486, %v504
        %v511 = vmul.f32 %v487, %v508
        %514 = vrot.lane.b32.xlu0 %v510, 127
        %v515 = vpop.permute.xlu0 %514
        %516 = vrot.lane.b32.xlu0 %v511, 127
        %v517 = vpop.permute.xlu0 %516
        %v520 = vadd.f32 %v500, %v515
        %v521 = vadd.f32 %v501, %v517
        %522 = vset.pattern.permute.xlu0 2
        %523 = vperm.xlu0 %522, %v488
        %v524 = vpop.permute.xlu0 %523
        %526 = vset.pattern.permute.xlu0 2
        %527 = vperm.xlu0 %526, %v489
        %v528 = vpop.permute.xlu0 %527
        %v530 = vmul.f32 %v486, %v524
        %v531 = vmul.f32 %v487, %v528
        %534 = vrot.lane.b32.xlu0 %v530, 126
        %v535 = vpop.permute.xlu0 %534
        %536 = vrot.lane.b32.xlu0 %v531, 126
        %v537 = vpop.permute.xlu0 %536
        %v540 = vadd.f32 %v520, %v535
        %v541 = vadd.f32 %v521, %v537
        %v542 = vld [vmem:[%s3] sm:$0xff]
        %v543 = vld [vmem:[%s3 + $0x8] sm:$0xff]
        %545 = vset.pattern.permute.xlu0 0
        %546 = vperm.xlu0 %545, %v542
        %v547 = vpop.permute.xlu0 %546
        %550 = vset.pattern.permute.xlu0 0
        %551 = vperm.xlu0 %550, %v543
        %v552 = vpop.permute.xlu0 %551
        %v554 = vmul.f32 %v486, %v547
        %v555 = vmul.f32 %v487, %v552
        %556 = vset.pattern.permute.xlu0 1
        %557 = vperm.xlu0 %556, %v542
        %v558 = vpop.permute.xlu0 %557
        %560 = vset.pattern.permute.xlu0 1
        %561 = vperm.xlu0 %560, %v543
        %v562 = vpop.permute.xlu0 %561
        %v564 = vmul.f32 %v486, %v558
        %v565 = vmul.f32 %v487, %v562
        %568 = vrot.lane.b32.xlu0 %v564, 127
        %v569 = vpop.permute.xlu0 %568
        %570 = vrot.lane.b32.xlu0 %v565, 127
        %v571 = vpop.permute.xlu0 %570
        %v574 = vadd.f32 %v554, %v569
        %v575 = vadd.f32 %v555, %v571
        %576 = vset.pattern.permute.xlu0 2
        %577 = vperm.xlu0 %576, %v542
        %v578 = vpop.permute.xlu0 %577
        %580 = vset.pattern.permute.xlu0 2
        %581 = vperm.xlu0 %580, %v543
        %v582 = vpop.permute.xlu0 %581
        %v584 = vmul.f32 %v486, %v578
        %v585 = vmul.f32 %v487, %v582
        %588 = vrot.lane.b32.xlu0 %v584, 126
        %v589 = vpop.permute.xlu0 %588
        %590 = vrot.lane.b32.xlu0 %v585, 126
        %v591 = vpop.permute.xlu0 %590
        %v594 = vadd.f32 %v574, %v589
        %v595 = vadd.f32 %v575, %v591
        %596 = vset.pattern.permute.xlu0 3
        %597 = vperm.xlu0 %596, %v542
        %v598 = vpop.permute.xlu0 %597
        %600 = vset.pattern.permute.xlu0 3
        %601 = vperm.xlu0 %600, %v543
        %v602 = vpop.permute.xlu0 %601
        %v604 = vmul.f32 %v486, %v598
        %v605 = vmul.f32 %v487, %v602
        %608 = vrot.lane.b32.xlu0 %v604, 125
        %v609 = vpop.permute.xlu0 %608
        %610 = vrot.lane.b32.xlu0 %v605, 125
        %v611 = vpop.permute.xlu0 %610
        %v614 = vadd.f32 %v594, %v609
        %v615 = vadd.f32 %v595, %v611
        %616 = vset.pattern.permute.xlu0 4
        %617 = vperm.xlu0 %616, %v542
        %v618 = vpop.permute.xlu0 %617
        %620 = vset.pattern.permute.xlu0 4
        %621 = vperm.xlu0 %620, %v543
        %v622 = vpop.permute.xlu0 %621
        %v624 = vmul.f32 %v486, %v618
        %v625 = vmul.f32 %v487, %v622
        %628 = vrot.lane.b32.xlu0 %v624, 124
        %v629 = vpop.permute.xlu0 %628
        %630 = vrot.lane.b32.xlu0 %v625, 124
        %v631 = vpop.permute.xlu0 %630
        %v634 = vadd.f32 %v614, %v629
        %v635 = vadd.f32 %v615, %v631
        %v636 = vlaneseq
        %v637 = vand.u32 %v636, 127
        %vm638 = vcmp.eq.s32.totalorder %v637, 0
        %641 = vrot.lane.b32.xlu0 %v486, 126
        %v642 = vpop.permute.xlu0 %641
        %643 = vrot.lane.b32.xlu0 %v487, 126
        %v644 = vpop.permute.xlu0 %643
        %v647 = vsel %vm638, -3e+38, %v642
        %v648 = vsel %vm638, -3e+38, %v644
        %vm649 = vcmp.eq.s32.totalorder %v637, 15
        %650 = vrot.lane.b32.xlu0 %v486, 124
        %v651 = vpop.permute.xlu0 %650
        %652 = vrot.lane.b32.xlu0 %v487, 124
        %v653 = vpop.permute.xlu0 %652
        %v656 = vsel %vm649, -3e+38, %v651
        %v657 = vsel %vm649, -3e+38, %v653
        %v658 = vmax.f32 %v647, %v656
        %v659 = vmax.f32 %v648, %v657
        %662 = vrot.lane.b32.xlu0 %v658, 3
        %v663 = vpop.permute.xlu0 %662
        %664 = vrot.lane.b32.xlu0 %v659, 3
        %v665 = vpop.permute.xlu0 %664
        %v668 = vmax.f32 %v486, %v663
        %v669 = vmax.f32 %v487, %v665
        %672 = vrot.lane.b32.xlu0 %v540, 126
        %v673 = vpop.permute.xlu0 %672
        %674 = vrot.lane.b32.xlu0 %v541, 126
        %v675 = vpop.permute.xlu0 %674
        %680 = vrot.lane.b32.xlu0 %v634, 127
        %v681 = vpop.permute.xlu0 %680
        %682 = vrot.lane.b32.xlu0 %v635, 127
        %v683 = vpop.permute.xlu0 %682
        %688 = vrot.lane.b32.xlu0 %v668, 125
        %v689 = vpop.permute.xlu0 %688
        %690 = vrot.lane.b32.xlu0 %v669, 125
        %v691 = vpop.permute.xlu0 %690
        %v694 = vpack.c.bf16 %v468, %v467
        %v695 = vpack.c.bf16 %v675, %v673
        %v696 = vpack.c.bf16 %v683, %v681
        %v697 = vpack.c.bf16 %v691, %v689
        %v698 = vld [vmem:[%s1] sm:$0xf]
        %v699 = vld [vmem:[%s1 + $0x4] sm:$0xf]
        %v700 = vld [vmem:[%s1 + $0x8] sm:$0xf]
        %v701 = vld [vmem:[%s1 + $0xc] sm:$0xf]
        %v702 = vld [vmem:[%s1 + $0x10] sm:$0xf]
        %v703 = vld [vmem:[%s1 + $0x14] sm:$0xf]
        %v704 = vld [vmem:[%s1 + $0x18] sm:$0xf]
        %v705 = vld [vmem:[%s1 + $0x1c] sm:$0xf]
        %v706 = vld [vmem:[%s1 + $0x20] sm:$0xf]
        %v707 = vld [vmem:[%s1 + $0x24] sm:$0xf]
        %v708 = vld [vmem:[%s1 + $0x28] sm:$0xf]
        %v709 = vld [vmem:[%s1 + $0x2c] sm:$0xf]
        %v710 = vld [vmem:[%s1 + $0x30] sm:$0xf]
        %v711 = vld [vmem:[%s1 + $0x34] sm:$0xf]
        %v712 = vld [vmem:[%s1 + $0x38] sm:$0xf]
        %v713 = vld [vmem:[%s1 + $0x3c] sm:$0xf]
        %v730 = vunpack.c.l.b16 %v698
        %v731 = vunpack.c.l.b16 %v699
        %v732 = vunpack.c.l.b16 %v700
        %v733 = vunpack.c.l.b16 %v701
        %v734 = vunpack.c.l.b16 %v702
        %v735 = vunpack.c.l.b16 %v703
        %v736 = vunpack.c.l.b16 %v704
        %v737 = vunpack.c.l.b16 %v705
        %v738 = vunpack.c.l.b16 %v706
        %v739 = vunpack.c.l.b16 %v707
        %v740 = vunpack.c.l.b16 %v708
        %v741 = vunpack.c.l.b16 %v709
        %v742 = vunpack.c.l.b16 %v710
        %v743 = vunpack.c.l.b16 %v711
        %v744 = vunpack.c.l.b16 %v712
        %v745 = vunpack.c.l.b16 %v713
        %v746 = vpack.c.b16 %v731, %v730
        %v747 = vpack.c.b16 %v733, %v732
        %v748 = vpack.c.b16 %v735, %v734
        %v749 = vpack.c.b16 %v737, %v736
        %v750 = vpack.c.b16 %v739, %v738
        %v751 = vpack.c.b16 %v741, %v740
        %v752 = vpack.c.b16 %v743, %v742
        %v753 = vpack.c.b16 %v745, %v744
        %vm754 = vcmask 523264
        %v756 = vsel %vm754, %v746, 0
        %v759 = vsel %vm754, %v747, 0
        %v762 = vsel %vm754, %v748, 0
        %v765 = vsel %vm754, %v749, 0
        %v768 = vsel %vm754, %v750, 0
        %v771 = vsel %vm754, %v751, 0
        %v774 = vsel %vm754, %v752, 0
        %v777 = vsel %vm754, %v753, 0
        %779 = vmatpush.bf16.msra.mxu0 0
        %780 = vmatpush.bf16.msra.mxu0 0
        %781 = vmatpush.bf16.msra.mxu0 0
        %782 = vmatpush.bf16.msra.mxu0 0
        %783 = vmatpush.bf16.msra.mxu0 %v697
        %784 = vmatpush.bf16.msra.mxu0 %v696
        %785 = vmatpush.bf16.msra.mxu0 %v695
        %786 = vmatpush.bf16.msra.mxu0 %v694
        %787 = vmatmul.bf16.gmra.mxu0 %v756
        %v788 = vpop.f32.mrf.mxu0
        %v789 = vadd.f32 0.0, %v788
        %v790 = vpop.f32.mrf.mxu0
        %v791 = vadd.f32 0.0, %v790
        %792 = vmatmul.bf16.gmra.mxu0 %v759
        %v793 = vpop.f32.mrf.mxu0
        %v794 = vadd.f32 0.0, %v793
        %v795 = vpop.f32.mrf.mxu0
        %v796 = vadd.f32 0.0, %v795
        %797 = vmatmul.bf16.gmra.mxu0 %v762
        %v798 = vpop.f32.mrf.mxu0
        %v799 = vadd.f32 0.0, %v798
        %v800 = vpop.f32.mrf.mxu0
        %v801 = vadd.f32 0.0, %v800
        %802 = vmatmul.bf16.gmra.mxu0 %v765
        %v803 = vpop.f32.mrf.mxu0
        %v804 = vadd.f32 0.0, %v803
        %v805 = vpop.f32.mrf.mxu0
        %v806 = vadd.f32 0.0, %v805
        %807 = vmatmul.bf16.gmra.mxu0 %v768
        %v808 = vpop.f32.mrf.mxu0
        %v809 = vadd.f32 0.0, %v808
        %v810 = vpop.f32.mrf.mxu0
        %v811 = vadd.f32 0.0, %v810
        %812 = vmatmul.bf16.gmra.mxu0 %v771
        %v813 = vpop.f32.mrf.mxu0
        %v814 = vadd.f32 0.0, %v813
        %v815 = vpop.f32.mrf.mxu0
        %v816 = vadd.f32 0.0, %v815
        %817 = vmatmul.bf16.gmra.mxu0 %v774
        %v818 = vpop.f32.mrf.mxu0
        %v819 = vadd.f32 0.0, %v818
        %v820 = vpop.f32.mrf.mxu0
        %v821 = vadd.f32 0.0, %v820
        %822 = vmatmul.bf16.gmra.mxu0 %v777
        %v823 = vpop.f32.mrf.mxu0
        %v824 = vadd.f32 0.0, %v823
        %v825 = vpop.f32.mrf.mxu0
        %v826 = vadd.f32 0.0, %v825
        %827 = vdwg.mxu0
        %v828 = vld [vmem:[%s4] sm:$0xff]
        %v829 = vld [vmem:[%s4 + $0x8] sm:$0xff]
        %v830 = vld [vmem:[%s4 + $0x10] sm:$0xff]
        %v831 = vld [vmem:[%s4 + $0x18] sm:$0xff]
        %v832 = vld [vmem:[%s4 + $0x20] sm:$0xff]
        %v833 = vld [vmem:[%s4 + $0x28] sm:$0xff]
        %v834 = vld [vmem:[%s4 + $0x30] sm:$0xff]
        %v835 = vld [vmem:[%s4 + $0x38] sm:$0xff]
        %v836 = vld [vmem:[%s4 + $0x40] sm:$0xff]
        %v837 = vld [vmem:[%s4 + $0x48] sm:$0xff]
        %v838 = vld [vmem:[%s4 + $0x50] sm:$0xff]
        %v839 = vld [vmem:[%s4 + $0x58] sm:$0xff]
        %v840 = vld [vmem:[%s4 + $0x60] sm:$0xff]
        %v841 = vld [vmem:[%s4 + $0x68] sm:$0xff]
        %v842 = vld [vmem:[%s4 + $0x70] sm:$0xff]
        %v843 = vld [vmem:[%s4 + $0x78] sm:$0xff]
        %845 = vset.pattern.permute.xlu0 0
        %846 = vperm.xlu0 %845, %v828
        %v847 = vpop.permute.xlu0 %846
        %850 = vset.pattern.permute.xlu0 0
        %851 = vperm.xlu0 %850, %v829
        %v852 = vpop.permute.xlu0 %851
        %855 = vset.pattern.permute.xlu0 0
        %856 = vperm.xlu0 %855, %v830
        %v857 = vpop.permute.xlu0 %856
        %860 = vset.pattern.permute.xlu0 0
        %861 = vperm.xlu0 %860, %v831
        %v862 = vpop.permute.xlu0 %861
        %865 = vset.pattern.permute.xlu0 0
        %866 = vperm.xlu0 %865, %v832
        %v867 = vpop.permute.xlu0 %866
        %870 = vset.pattern.permute.xlu0 0
        %871 = vperm.xlu0 %870, %v833
        %v872 = vpop.permute.xlu0 %871
        %875 = vset.pattern.permute.xlu0 0
        %876 = vperm.xlu0 %875, %v834
        %v877 = vpop.permute.xlu0 %876
        %880 = vset.pattern.permute.xlu0 0
        %881 = vperm.xlu0 %880, %v835
        %v882 = vpop.permute.xlu0 %881
        %885 = vset.pattern.permute.xlu0 0
        %886 = vperm.xlu0 %885, %v836
        %v887 = vpop.permute.xlu0 %886
        %890 = vset.pattern.permute.xlu0 0
        %891 = vperm.xlu0 %890, %v837
        %v892 = vpop.permute.xlu0 %891
        %895 = vset.pattern.permute.xlu0 0
        %896 = vperm.xlu0 %895, %v838
        %v897 = vpop.permute.xlu0 %896
        %900 = vset.pattern.permute.xlu0 0
        %901 = vperm.xlu0 %900, %v839
        %v902 = vpop.permute.xlu0 %901
        %905 = vset.pattern.permute.xlu0 0
        %906 = vperm.xlu0 %905, %v840
        %v907 = vpop.permute.xlu0 %906
        %910 = vset.pattern.permute.xlu0 0
        %911 = vperm.xlu0 %910, %v841
        %v912 = vpop.permute.xlu0 %911
        %915 = vset.pattern.permute.xlu0 0
        %916 = vperm.xlu0 %915, %v842
        %v917 = vpop.permute.xlu0 %916
        %920 = vset.pattern.permute.xlu0 0
        %921 = vperm.xlu0 %920, %v843
        %v922 = vpop.permute.xlu0 %921
        %v924 = vmul.f32 %v789, %v847
        %v925 = vmul.f32 %v791, %v852
        %v926 = vmul.f32 %v794, %v857
        %v927 = vmul.f32 %v796, %v862
        %v928 = vmul.f32 %v799, %v867
        %v929 = vmul.f32 %v801, %v872
        %v930 = vmul.f32 %v804, %v877
        %v931 = vmul.f32 %v806, %v882
        %v932 = vmul.f32 %v809, %v887
        %v933 = vmul.f32 %v811, %v892
        %v934 = vmul.f32 %v814, %v897
        %v935 = vmul.f32 %v816, %v902
        %v936 = vmul.f32 %v819, %v907
        %v937 = vmul.f32 %v821, %v912
        %v938 = vmul.f32 %v824, %v917
        %v939 = vmul.f32 %v826, %v922
        %v940 = vld [vmem:[%s5] sm:$0xff]
        %v941 = vld [vmem:[%s5 + $0x8] sm:$0xff]
        %v942 = vld [vmem:[%s5 + $0x10] sm:$0xff]
        %v943 = vld [vmem:[%s5 + $0x18] sm:$0xff]
        %v944 = vld [vmem:[%s5 + $0x20] sm:$0xff]
        %v945 = vld [vmem:[%s5 + $0x28] sm:$0xff]
        %v946 = vld [vmem:[%s5 + $0x30] sm:$0xff]
        %v947 = vld [vmem:[%s5 + $0x38] sm:$0xff]
        %v948 = vld [vmem:[%s5 + $0x40] sm:$0xff]
        %v949 = vld [vmem:[%s5 + $0x48] sm:$0xff]
        %v950 = vld [vmem:[%s5 + $0x50] sm:$0xff]
        %v951 = vld [vmem:[%s5 + $0x58] sm:$0xff]
        %v952 = vld [vmem:[%s5 + $0x60] sm:$0xff]
        %v953 = vld [vmem:[%s5 + $0x68] sm:$0xff]
        %v954 = vld [vmem:[%s5 + $0x70] sm:$0xff]
        %v955 = vld [vmem:[%s5 + $0x78] sm:$0xff]
        %957 = vset.pattern.permute.xlu0 0
        %958 = vperm.xlu0 %957, %v940
        %v959 = vpop.permute.xlu0 %958
        %962 = vset.pattern.permute.xlu0 0
        %963 = vperm.xlu0 %962, %v941
        %v964 = vpop.permute.xlu0 %963
        %967 = vset.pattern.permute.xlu0 0
        %968 = vperm.xlu0 %967, %v942
        %v969 = vpop.permute.xlu0 %968
        %972 = vset.pattern.permute.xlu0 0
        %973 = vperm.xlu0 %972, %v943
        %v974 = vpop.permute.xlu0 %973
        %977 = vset.pattern.permute.xlu0 0
        %978 = vperm.xlu0 %977, %v944
        %v979 = vpop.permute.xlu0 %978
        %982 = vset.pattern.permute.xlu0 0
        %983 = vperm.xlu0 %982, %v945
        %v984 = vpop.permute.xlu0 %983
        %987 = vset.pattern.permute.xlu0 0
        %988 = vperm.xlu0 %987, %v946
        %v989 = vpop.permute.xlu0 %988
        %992 = vset.pattern.permute.xlu0 0
        %993 = vperm.xlu0 %992, %v947
        %v994 = vpop.permute.xlu0 %993
        %997 = vset.pattern.permute.xlu0 0
        %998 = vperm.xlu0 %997, %v948
        %v999 = vpop.permute.xlu0 %998
        %1002 = vset.pattern.permute.xlu0 0
        %1003 = vperm.xlu0 %1002, %v949
        %v1004 = vpop.permute.xlu0 %1003
        %1007 = vset.pattern.permute.xlu0 0
        %1008 = vperm.xlu0 %1007, %v950
        %v1009 = vpop.permute.xlu0 %1008
        %1012 = vset.pattern.permute.xlu0 0
        %1013 = vperm.xlu0 %1012, %v951
        %v1014 = vpop.permute.xlu0 %1013
        %1017 = vset.pattern.permute.xlu0 0
        %1018 = vperm.xlu0 %1017, %v952
        %v1019 = vpop.permute.xlu0 %1018
        %1022 = vset.pattern.permute.xlu0 0
        %1023 = vperm.xlu0 %1022, %v953
        %v1024 = vpop.permute.xlu0 %1023
        %1027 = vset.pattern.permute.xlu0 0
        %1028 = vperm.xlu0 %1027, %v954
        %v1029 = vpop.permute.xlu0 %1028
        %1032 = vset.pattern.permute.xlu0 0
        %1033 = vperm.xlu0 %1032, %v955
        %v1034 = vpop.permute.xlu0 %1033
        %v1036 = vadd.f32 %v924, %v959
        %v1037 = vadd.f32 %v925, %v964
        %v1038 = vadd.f32 %v926, %v969
        %v1039 = vadd.f32 %v927, %v974
        %v1040 = vadd.f32 %v928, %v979
        %v1041 = vadd.f32 %v929, %v984
        %v1042 = vadd.f32 %v930, %v989
        %v1043 = vadd.f32 %v931, %v994
        %v1044 = vadd.f32 %v932, %v999
        %v1045 = vadd.f32 %v933, %v1004
        %v1046 = vadd.f32 %v934, %v1009
        %v1047 = vadd.f32 %v935, %v1014
        %v1048 = vadd.f32 %v936, %v1019
        %v1049 = vadd.f32 %v937, %v1024
        %v1050 = vadd.f32 %v938, %v1029
        %v1051 = vadd.f32 %v939, %v1034
        %v1052 = vmax.f32 %v1036, 0.0
        %v1053 = vmax.f32 %v1037, 0.0
        %v1054 = vmax.f32 %v1038, 0.0
        %v1055 = vmax.f32 %v1039, 0.0
        %v1056 = vmax.f32 %v1040, 0.0
        %v1057 = vmax.f32 %v1041, 0.0
        %v1058 = vmax.f32 %v1042, 0.0
        %v1059 = vmax.f32 %v1043, 0.0
        %v1060 = vmax.f32 %v1044, 0.0
        %v1061 = vmax.f32 %v1045, 0.0
        %v1062 = vmax.f32 %v1046, 0.0
        %v1063 = vmax.f32 %v1047, 0.0
        %v1064 = vmax.f32 %v1048, 0.0
        %v1065 = vmax.f32 %v1049, 0.0
        %v1066 = vmax.f32 %v1050, 0.0
        %v1067 = vmax.f32 %v1051, 0.0
        %vm1068 = vcmask 130048
        %v1069 = vsel %vm1068, %v1052, 0.0
        %1070 = vadd.xlane.f32.xlu0 %v1069
        %v1071 = vpop.xlane.xlu0 %1070
        %v1072 = vsel %vm1068, %v1053, 0.0
        %1073 = vadd.xlane.f32.xlu0 %v1072
        %v1074 = vpop.xlane.xlu0 %1073
        %v1075 = vsel %vm1068, %v1054, 0.0
        %1076 = vadd.xlane.f32.xlu0 %v1075
        %v1077 = vpop.xlane.xlu0 %1076
        %v1078 = vsel %vm1068, %v1055, 0.0
        %1079 = vadd.xlane.f32.xlu0 %v1078
        %v1080 = vpop.xlane.xlu0 %1079
        %v1081 = vsel %vm1068, %v1056, 0.0
        %1082 = vadd.xlane.f32.xlu0 %v1081
        %v1083 = vpop.xlane.xlu0 %1082
        %v1084 = vsel %vm1068, %v1057, 0.0
        %1085 = vadd.xlane.f32.xlu0 %v1084
        %v1086 = vpop.xlane.xlu0 %1085
        %v1087 = vsel %vm1068, %v1058, 0.0
        %1088 = vadd.xlane.f32.xlu0 %v1087
        %v1089 = vpop.xlane.xlu0 %1088
        %v1090 = vsel %vm1068, %v1059, 0.0
        %1091 = vadd.xlane.f32.xlu0 %v1090
        %v1092 = vpop.xlane.xlu0 %1091
        %v1093 = vsel %vm1068, %v1060, 0.0
        %1094 = vadd.xlane.f32.xlu0 %v1093
        %v1095 = vpop.xlane.xlu0 %1094
        %v1096 = vsel %vm1068, %v1061, 0.0
        %1097 = vadd.xlane.f32.xlu0 %v1096
        %v1098 = vpop.xlane.xlu0 %1097
        %v1099 = vsel %vm1068, %v1062, 0.0
        %1100 = vadd.xlane.f32.xlu0 %v1099
        %v1101 = vpop.xlane.xlu0 %1100
        %v1102 = vsel %vm1068, %v1063, 0.0
        %1103 = vadd.xlane.f32.xlu0 %v1102
        %v1104 = vpop.xlane.xlu0 %1103
        %v1105 = vsel %vm1068, %v1064, 0.0
        %1106 = vadd.xlane.f32.xlu0 %v1105
        %v1107 = vpop.xlane.xlu0 %1106
        %v1108 = vsel %vm1068, %v1065, 0.0
        %1109 = vadd.xlane.f32.xlu0 %v1108
        %v1110 = vpop.xlane.xlu0 %1109
        %v1111 = vsel %vm1068, %v1066, 0.0
        %1112 = vadd.xlane.f32.xlu0 %v1111
        %v1113 = vpop.xlane.xlu0 %1112
        %v1114 = vsel %vm1068, %v1067, 0.0
        %1115 = vadd.xlane.f32.xlu0 %v1114
        %v1116 = vpop.xlane.xlu0 %1115
        %v1117 = vrcp.pop 16.0
        %v1118 = vmul.f32 16.0, %v1117
        %v1119 = vsub.f32 1.0, %v1118
        %v1120 = vmul.f32 %v1117, %v1119
        %v1121 = vadd.f32 %v1117, %v1120
        %vm1122 = vweird.f32 %v1117
        %v1123 = vsel %vm1122, %v1117, %v1121
        %v1124 = vmul.f32 %v1071, %v1123
        %v1125 = vmul.f32 %v1074, %v1123
        %v1126 = vmul.f32 %v1077, %v1123
        %v1127 = vmul.f32 %v1080, %v1123
        %v1128 = vmul.f32 %v1083, %v1123
        %v1129 = vmul.f32 %v1086, %v1123
        %v1130 = vmul.f32 %v1089, %v1123
        %v1131 = vmul.f32 %v1092, %v1123
        %v1132 = vmul.f32 %v1095, %v1123
        %v1133 = vmul.f32 %v1098, %v1123
        %v1134 = vmul.f32 %v1101, %v1123
        %v1135 = vmul.f32 %v1104, %v1123
        %v1136 = vmul.f32 %v1107, %v1123
        %v1137 = vmul.f32 %v1110, %v1123
        %v1138 = vmul.f32 %v1113, %v1123
        %v1139 = vmul.f32 %v1116, %v1123
        %v1140 = vld [vmem:[%s6] sm:$0xff]
        %v1141 = vld [vmem:[%s6 + $0x8] sm:$0xff]
        %v1142 = vld [vmem:[%s6 + $0x10] sm:$0xff]
        %v1143 = vld [vmem:[%s6 + $0x18] sm:$0xff]
        %v1144 = vld [vmem:[%s6 + $0x20] sm:$0xff]
        %v1145 = vld [vmem:[%s6 + $0x28] sm:$0xff]
        %v1146 = vld [vmem:[%s6 + $0x30] sm:$0xff]
        %v1147 = vld [vmem:[%s6 + $0x38] sm:$0xff]
        %v1148 = vld [vmem:[%s6 + $0x40] sm:$0xff]
        %v1149 = vld [vmem:[%s6 + $0x48] sm:$0xff]
        %v1150 = vld [vmem:[%s6 + $0x50] sm:$0xff]
        %v1151 = vld [vmem:[%s6 + $0x58] sm:$0xff]
        %v1152 = vld [vmem:[%s6 + $0x60] sm:$0xff]
        %v1153 = vld [vmem:[%s6 + $0x68] sm:$0xff]
        %v1154 = vld [vmem:[%s6 + $0x70] sm:$0xff]
        %v1155 = vld [vmem:[%s6 + $0x78] sm:$0xff]
        %v1156 = vmul.f32 %v1140, %v1124
        %v1157 = vmul.f32 %v1141, %v1125
        %v1158 = vmul.f32 %v1142, %v1126
        %v1159 = vmul.f32 %v1143, %v1127
        %v1160 = vmul.f32 %v1144, %v1128
        %v1161 = vmul.f32 %v1145, %v1129
        %v1162 = vmul.f32 %v1146, %v1130
        %v1163 = vmul.f32 %v1147, %v1131
        %v1164 = vmul.f32 %v1148, %v1132
        %v1165 = vmul.f32 %v1149, %v1133
        %v1166 = vmul.f32 %v1150, %v1134
        %v1167 = vmul.f32 %v1151, %v1135
        %v1168 = vmul.f32 %v1152, %v1136
        %v1169 = vmul.f32 %v1153, %v1137
        %v1170 = vmul.f32 %v1154, %v1138
        %v1171 = vmul.f32 %v1155, %v1139
        %vm1172 = vcmask 64512
        %v1173 = vsel %vm1172, %v1156, 0.0
        %v1174 = vsel %vm1172, %v1157, 0.0
        %v1175 = vadd.f32 %v1173, %v1174
        %v1176 = vsel %vm1172, %v1158, 0.0
        %v1177 = vadd.f32 %v1175, %v1176
        %v1178 = vsel %vm1172, %v1159, 0.0
        %v1179 = vadd.f32 %v1177, %v1178
        %v1180 = vsel %vm1172, %v1160, 0.0
        %v1181 = vadd.f32 %v1179, %v1180
        %v1182 = vsel %vm1172, %v1161, 0.0
        %v1183 = vadd.f32 %v1181, %v1182
        %v1184 = vsel %vm1172, %v1162, 0.0
        %v1185 = vadd.f32 %v1183, %v1184
        %v1186 = vsel %vm1172, %v1163, 0.0
        %v1187 = vadd.f32 %v1185, %v1186
        %v1188 = vsel %vm1172, %v1164, 0.0
        %v1189 = vadd.f32 %v1187, %v1188
        %v1190 = vsel %vm1172, %v1165, 0.0
        %v1191 = vadd.f32 %v1189, %v1190
        %v1192 = vsel %vm1172, %v1166, 0.0
        %v1193 = vadd.f32 %v1191, %v1192
        %v1194 = vsel %vm1172, %v1167, 0.0
        %v1195 = vadd.f32 %v1193, %v1194
        %v1196 = vsel %vm1172, %v1168, 0.0
        %v1197 = vadd.f32 %v1195, %v1196
        %v1198 = vsel %vm1172, %v1169, 0.0
        %v1199 = vadd.f32 %v1197, %v1198
        %v1200 = vsel %vm1172, %v1170, 0.0
        %v1201 = vadd.f32 %v1199, %v1200
        %v1202 = vsel %vm1172, %v1171, 0.0
        %v1203 = vadd.f32 %v1201, %v1202
        %v1204 = vrot.slane %v1203, 4
        %v1205 = vadd.f32 %v1203, %v1204
        %v1206 = vrot.slane %v1205, 2
        %v1207 = vadd.f32 %v1205, %v1206
        %v1208 = vrot.slane %v1207, 1
        %v1209 = vadd.f32 %v1207, %v1208
        %v1210 = vmax.f32 %v1209, 0.0
        %v1211 = vld [vmem:[%s7] sm:$0xff]
        %v1212 = vld [vmem:[%s7 + $0x8] sm:$0xff]
        %v1213 = vld [vmem:[%s7 + $0x10] sm:$0xff]
        %v1214 = vld [vmem:[%s7 + $0x18] sm:$0xff]
        %v1215 = vld [vmem:[%s7 + $0x20] sm:$0xff]
        %v1216 = vld [vmem:[%s7 + $0x28] sm:$0xff]
        %v1217 = vld [vmem:[%s7 + $0x30] sm:$0xff]
        %v1218 = vld [vmem:[%s7 + $0x38] sm:$0xff]
        %v1219 = vld [vmem:[%s7 + $0x40] sm:$0xff]
        %v1220 = vld [vmem:[%s7 + $0x48] sm:$0xff]
        %v1221 = vld [vmem:[%s7 + $0x50] sm:$0xff]
        %v1222 = vld [vmem:[%s7 + $0x58] sm:$0xff]
        %v1223 = vld [vmem:[%s7 + $0x60] sm:$0xff]
        %v1224 = vld [vmem:[%s7 + $0x68] sm:$0xff]
        %v1225 = vld [vmem:[%s7 + $0x70] sm:$0xff]
        %v1226 = vld [vmem:[%s7 + $0x78] sm:$0xff]
        %v1227 = vmul.f32 %v1211, %v1210
        %v1228 = vmul.f32 %v1212, %v1210
        %v1229 = vmul.f32 %v1213, %v1210
        %v1230 = vmul.f32 %v1214, %v1210
        %v1231 = vmul.f32 %v1215, %v1210
        %v1232 = vmul.f32 %v1216, %v1210
        %v1233 = vmul.f32 %v1217, %v1210
        %v1234 = vmul.f32 %v1218, %v1210
        %v1235 = vmul.f32 %v1219, %v1210
        %v1236 = vmul.f32 %v1220, %v1210
        %v1237 = vmul.f32 %v1221, %v1210
        %v1238 = vmul.f32 %v1222, %v1210
        %v1239 = vmul.f32 %v1223, %v1210
        %v1240 = vmul.f32 %v1224, %v1210
        %v1241 = vmul.f32 %v1225, %v1210
        %v1242 = vmul.f32 %v1226, %v1210
        %v1243 = vsel %vm1172, %v1227, 0.0
        %1244 = vadd.xlane.f32.xlu0 %v1243
        %v1245 = vpop.xlane.xlu0 %1244
        %v1246 = vsel %vm1172, %v1228, 0.0
        %1247 = vadd.xlane.f32.xlu0 %v1246
        %v1248 = vpop.xlane.xlu0 %1247
        %v1249 = vsel %vm1172, %v1229, 0.0
        %1250 = vadd.xlane.f32.xlu0 %v1249
        %v1251 = vpop.xlane.xlu0 %1250
        %v1252 = vsel %vm1172, %v1230, 0.0
        %1253 = vadd.xlane.f32.xlu0 %v1252
        %v1254 = vpop.xlane.xlu0 %1253
        %v1255 = vsel %vm1172, %v1231, 0.0
        %1256 = vadd.xlane.f32.xlu0 %v1255
        %v1257 = vpop.xlane.xlu0 %1256
        %v1258 = vsel %vm1172, %v1232, 0.0
        %1259 = vadd.xlane.f32.xlu0 %v1258
        %v1260 = vpop.xlane.xlu0 %1259
        %v1261 = vsel %vm1172, %v1233, 0.0
        %1262 = vadd.xlane.f32.xlu0 %v1261
        %v1263 = vpop.xlane.xlu0 %1262
        %v1264 = vsel %vm1172, %v1234, 0.0
        %1265 = vadd.xlane.f32.xlu0 %v1264
        %v1266 = vpop.xlane.xlu0 %1265
        %v1267 = vsel %vm1172, %v1235, 0.0
        %1268 = vadd.xlane.f32.xlu0 %v1267
        %v1269 = vpop.xlane.xlu0 %1268
        %v1270 = vsel %vm1172, %v1236, 0.0
        %1271 = vadd.xlane.f32.xlu0 %v1270
        %v1272 = vpop.xlane.xlu0 %1271
        %v1273 = vsel %vm1172, %v1237, 0.0
        %1274 = vadd.xlane.f32.xlu0 %v1273
        %v1275 = vpop.xlane.xlu0 %1274
        %v1276 = vsel %vm1172, %v1238, 0.0
        %1277 = vadd.xlane.f32.xlu0 %v1276
        %v1278 = vpop.xlane.xlu0 %1277
        %v1279 = vsel %vm1172, %v1239, 0.0
        %1280 = vadd.xlane.f32.xlu0 %v1279
        %v1281 = vpop.xlane.xlu0 %1280
        %v1282 = vsel %vm1172, %v1240, 0.0
        %1283 = vadd.xlane.f32.xlu0 %v1282
        %v1284 = vpop.xlane.xlu0 %1283
        %v1285 = vsel %vm1172, %v1241, 0.0
        %1286 = vadd.xlane.f32.xlu0 %v1285
        %v1287 = vpop.xlane.xlu0 %1286
        %v1288 = vsel %vm1172, %v1242, 0.0
        %1289 = vadd.xlane.f32.xlu0 %v1288
        %v1290 = vpop.xlane.xlu0 %1289
        %v1291 = vsub.f32 0.0, %v1245
        %v1292 = vsub.f32 0.0, %v1248
        %v1293 = vsub.f32 0.0, %v1251
        %v1294 = vsub.f32 0.0, %v1254
        %v1295 = vsub.f32 0.0, %v1257
        %v1296 = vsub.f32 0.0, %v1260
        %v1297 = vsub.f32 0.0, %v1263
        %v1298 = vsub.f32 0.0, %v1266
        %v1299 = vsub.f32 0.0, %v1269
        %v1300 = vsub.f32 0.0, %v1272
        %v1301 = vsub.f32 0.0, %v1275
        %v1302 = vsub.f32 0.0, %v1278
        %v1303 = vsub.f32 0.0, %v1281
        %v1304 = vsub.f32 0.0, %v1284
        %v1305 = vsub.f32 0.0, %v1287
        %v1306 = vsub.f32 0.0, %v1290
        %v1307 = vmul.f32 %v1291, 1.442695
        %v1308 = vpow.pop %v1307
        %v1309 = vmul.f32 %v1292, 1.442695
        %v1310 = vpow.pop %v1309
        %v1311 = vmul.f32 %v1293, 1.442695
        %v1312 = vpow.pop %v1311
        %v1313 = vmul.f32 %v1294, 1.442695
        %v1314 = vpow.pop %v1313
        %v1315 = vmul.f32 %v1295, 1.442695
        %v1316 = vpow.pop %v1315
        %v1317 = vmul.f32 %v1296, 1.442695
        %v1318 = vpow.pop %v1317
        %v1319 = vmul.f32 %v1297, 1.442695
        %v1320 = vpow.pop %v1319
        %v1321 = vmul.f32 %v1298, 1.442695
        %v1322 = vpow.pop %v1321
        %v1323 = vmul.f32 %v1299, 1.442695
        %v1324 = vpow.pop %v1323
        %v1325 = vmul.f32 %v1300, 1.442695
        %v1326 = vpow.pop %v1325
        %v1327 = vmul.f32 %v1301, 1.442695
        %v1328 = vpow.pop %v1327
        %v1329 = vmul.f32 %v1302, 1.442695
        %v1330 = vpow.pop %v1329
        %v1331 = vmul.f32 %v1303, 1.442695
        %v1332 = vpow.pop %v1331
        %v1333 = vmul.f32 %v1304, 1.442695
        %v1334 = vpow.pop %v1333
        %v1335 = vmul.f32 %v1305, 1.442695
        %v1336 = vpow.pop %v1335
        %v1337 = vmul.f32 %v1306, 1.442695
        %v1338 = vpow.pop %v1337
        %v1339 = vadd.f32 %v1308, 1.0
        %v1340 = vadd.f32 %v1310, 1.0
        %v1341 = vadd.f32 %v1312, 1.0
        %v1342 = vadd.f32 %v1314, 1.0
        %v1343 = vadd.f32 %v1316, 1.0
        %v1344 = vadd.f32 %v1318, 1.0
        %v1345 = vadd.f32 %v1320, 1.0
        %v1346 = vadd.f32 %v1322, 1.0
        %v1347 = vadd.f32 %v1324, 1.0
        %v1348 = vadd.f32 %v1326, 1.0
        %v1349 = vadd.f32 %v1328, 1.0
        %v1350 = vadd.f32 %v1330, 1.0
        %v1351 = vadd.f32 %v1332, 1.0
        %v1352 = vadd.f32 %v1334, 1.0
        %v1353 = vadd.f32 %v1336, 1.0
        %v1354 = vadd.f32 %v1338, 1.0
        %v1355 = vrcp.pop %v1339
        %v1356 = vrcp.pop %v1340
        %v1357 = vrcp.pop %v1341
        %v1358 = vrcp.pop %v1342
        %v1359 = vrcp.pop %v1343
        %v1360 = vrcp.pop %v1344
        %v1361 = vrcp.pop %v1345
        %v1362 = vrcp.pop %v1346
        %v1363 = vrcp.pop %v1347
        %v1364 = vrcp.pop %v1348
        %v1365 = vrcp.pop %v1349
        %v1366 = vrcp.pop %v1350
        %v1367 = vrcp.pop %v1351
        %v1368 = vrcp.pop %v1352
        %v1369 = vrcp.pop %v1353
        %v1370 = vrcp.pop %v1354
        %v1371 = vmul.f32 %v1052, %v1355
        %v1372 = vmul.f32 %v1053, %v1356
        %v1373 = vmul.f32 %v1054, %v1357
        %v1374 = vmul.f32 %v1055, %v1358
        %v1375 = vmul.f32 %v1056, %v1359
        %v1376 = vmul.f32 %v1057, %v1360
        %v1377 = vmul.f32 %v1058, %v1361
        %v1378 = vmul.f32 %v1059, %v1362
        %v1379 = vmul.f32 %v1060, %v1363
        %v1380 = vmul.f32 %v1061, %v1364
        %v1381 = vmul.f32 %v1062, %v1365
        %v1382 = vmul.f32 %v1063, %v1366
        %v1383 = vmul.f32 %v1064, %v1367
        %v1384 = vmul.f32 %v1065, %v1368
        %v1385 = vmul.f32 %v1066, %v1369
        %v1386 = vmul.f32 %v1067, %v1370
        %v1387 = vld [vmem:[%s8] sm:$0xf]
        %v1388 = vld [vmem:[%s8 + $0x4] sm:$0xf]
        %v1389 = vpack.c.bf16 %v1372, %v1371
        %v1390 = vpack.c.bf16 %v1374, %v1373
        %v1391 = vpack.c.bf16 %v1376, %v1375
        %v1392 = vpack.c.bf16 %v1378, %v1377
        %v1393 = vpack.c.bf16 %v1380, %v1379
        %v1394 = vpack.c.bf16 %v1382, %v1381
        %v1395 = vpack.c.bf16 %v1384, %v1383
        %v1396 = vpack.c.bf16 %v1386, %v1385
        %v1399 = vunpack.c.l.b16 %v1387
        %v1400 = vunpack.c.l.b16 %v1388
        %v1401 = vpack.c.b16 %v1400, %v1399
        %1403 = vmatpush.bf16.msra.mxu0 %v1396
        %1404 = vmatpush.bf16.msra.mxu0 %v1395
        %1405 = vmatpush.bf16.msra.mxu0 %v1394
        %1406 = vmatpush.bf16.msra.mxu0 %v1393
        %1407 = vmatpush.bf16.msra.mxu0 %v1392
        %1408 = vmatpush.bf16.msra.mxu0 %v1391
        %1409 = vmatpush.bf16.msra.mxu0 %v1390
        %1410 = vmatpush.bf16.msra.mxu0 %v1389
        %1411 = vmatmul.bf16.gmra.mxu0 %v1401
        %v1412 = vpop.f32.mrf.mxu0
        %v1413 = vadd.f32 0.0, %v1412
        %v1414 = vpop.f32.mrf.mxu0
        %v1415 = vadd.f32 0.0, %v1414
        %1416 = vdwg.mxu0
        %v1417 = vld [vmem:[%s9] sm:$0xff]
        %v1418 = vld [vmem:[%s9 + $0x8] sm:$0xff]
        %1420 = vset.pattern.permute.xlu0 0
        %1421 = vperm.xlu0 %1420, %v1417
        %v1422 = vpop.permute.xlu0 %1421
        %1425 = vset.pattern.permute.xlu0 0
        %1426 = vperm.xlu0 %1425, %v1418
        %v1427 = vpop.permute.xlu0 %1426
        %v1429 = vmul.f32 %v1413, %v1422
        %v1430 = vmul.f32 %v1415, %v1427
        %v1431 = vld [vmem:[%s10] sm:$0xff]
        %v1432 = vld [vmem:[%s10 + $0x8] sm:$0xff]
        %1434 = vset.pattern.permute.xlu0 0
        %1435 = vperm.xlu0 %1434, %v1431
        %v1436 = vpop.permute.xlu0 %1435
        %1439 = vset.pattern.permute.xlu0 0
        %1440 = vperm.xlu0 %1439, %v1432
        %v1441 = vpop.permute.xlu0 %1440
        %v1443 = vadd.f32 %v1429, %v1436
        %v1444 = vadd.f32 %v1430, %v1441
        %v1445 = vmax.f32 %v1443, 0.0
        %v1446 = vmax.f32 %v1444, 0.0
        %1449 = vrot.lane.b32.xlu0 %v1445, 3
        %v1450 = vpop.permute.xlu0 %1449
        %1451 = vrot.lane.b32.xlu0 %v1446, 3
        %v1452 = vpop.permute.xlu0 %1451
        %1455 = vst.msk [vmem:[#allocation2] sm:$0xff] %vm483, %v1450
        %1456 = vst.msk [vmem:[#allocation2 + $0x8] sm:$0xff] %vm483, %v1452
        %v1457 = vld [vmem:[#allocation2] sm:$0xff]
        %v1458 = vld [vmem:[#allocation2 + $0x8] sm:$0xff]
        %v1459 = vld [vmem:[%s11] sm:$0xff]
        %v1460 = vld [vmem:[%s11 + $0x8] sm:$0xff]
        %1462 = vset.pattern.permute.xlu0 0
        %1463 = vperm.xlu0 %1462, %v1459
        %v1464 = vpop.permute.xlu0 %1463
        %1467 = vset.pattern.permute.xlu0 0
        %1468 = vperm.xlu0 %1467, %v1460
        %v1469 = vpop.permute.xlu0 %1468
        %v1471 = vmul.f32 %v1457, %v1464
        %v1472 = vmul.f32 %v1458, %v1469
        %1473 = vset.pattern.permute.xlu0 1
        %1474 = vperm.xlu0 %1473, %v1459
        %v1475 = vpop.permute.xlu0 %1474
        %1477 = vset.pattern.permute.xlu0 1
        %1478 = vperm.xlu0 %1477, %v1460
        %v1479 = vpop.permute.xlu0 %1478
        %v1481 = vmul.f32 %v1457, %v1475
        %v1482 = vmul.f32 %v1458, %v1479
        %1485 = vrot.lane.b32.xlu0 %v1481, 127
        %v1486 = vpop.permute.xlu0 %1485
        %1487 = vrot.lane.b32.xlu0 %v1482, 127
        %v1488 = vpop.permute.xlu0 %1487
        %v1491 = vadd.f32 %v1471, %v1486
        %v1492 = vadd.f32 %v1472, %v1488
        %1493 = vset.pattern.permute.xlu0 2
        %1494 = vperm.xlu0 %1493, %v1459
        %v1495 = vpop.permute.xlu0 %1494
        %1497 = vset.pattern.permute.xlu0 2
        %1498 = vperm.xlu0 %1497, %v1460
        %v1499 = vpop.permute.xlu0 %1498
        %v1501 = vmul.f32 %v1457, %v1495
        %v1502 = vmul.f32 %v1458, %v1499
        %1505 = vrot.lane.b32.xlu0 %v1501, 126
        %v1506 = vpop.permute.xlu0 %1505
        %1507 = vrot.lane.b32.xlu0 %v1502, 126
        %v1508 = vpop.permute.xlu0 %1507
        %v1511 = vadd.f32 %v1491, %v1506
        %v1512 = vadd.f32 %v1492, %v1508
        %1513 = vset.pattern.permute.xlu0 3
        %1514 = vperm.xlu0 %1513, %v1459
        %v1515 = vpop.permute.xlu0 %1514
        %1517 = vset.pattern.permute.xlu0 3
        %1518 = vperm.xlu0 %1517, %v1460
        %v1519 = vpop.permute.xlu0 %1518
        %v1521 = vmul.f32 %v1457, %v1515
        %v1522 = vmul.f32 %v1458, %v1519
        %1525 = vrot.lane.b32.xlu0 %v1521, 125
        %v1526 = vpop.permute.xlu0 %1525
        %1527 = vrot.lane.b32.xlu0 %v1522, 125
        %v1528 = vpop.permute.xlu0 %1527
        %v1531 = vadd.f32 %v1511, %v1526
        %v1532 = vadd.f32 %v1512, %v1528
        %1533 = vset.pattern.permute.xlu0 4
        %1534 = vperm.xlu0 %1533, %v1459
        %v1535 = vpop.permute.xlu0 %1534
        %1537 = vset.pattern.permute.xlu0 4
        %1538 = vperm.xlu0 %1537, %v1460
        %v1539 = vpop.permute.xlu0 %1538
        %v1541 = vmul.f32 %v1457, %v1535
        %v1542 = vmul.f32 %v1458, %v1539
        %1545 = vrot.lane.b32.xlu0 %v1541, 124
        %v1546 = vpop.permute.xlu0 %1545
        %1547 = vrot.lane.b32.xlu0 %v1542, 124
        %v1548 = vpop.permute.xlu0 %1547
        %v1551 = vadd.f32 %v1531, %v1546
        %v1552 = vadd.f32 %v1532, %v1548
        %1553 = vset.pattern.permute.xlu0 5
        %1554 = vperm.xlu0 %1553, %v1459
        %v1555 = vpop.permute.xlu0 %1554
        %1557 = vset.pattern.permute.xlu0 5
        %1558 = vperm.xlu0 %1557, %v1460
        %v1559 = vpop.permute.xlu0 %1558
        %v1561 = vmul.f32 %v1457, %v1555
        %v1562 = vmul.f32 %v1458, %v1559
        %1565 = vrot.lane.b32.xlu0 %v1561, 123
        %v1566 = vpop.permute.xlu0 %1565
        %1567 = vrot.lane.b32.xlu0 %v1562, 123
        %v1568 = vpop.permute.xlu0 %1567
        %v1571 = vadd.f32 %v1551, %v1566
        %v1572 = vadd.f32 %v1552, %v1568
        %1573 = vset.pattern.permute.xlu0 6
        %1574 = vperm.xlu0 %1573, %v1459
        %v1575 = vpop.permute.xlu0 %1574
        %1577 = vset.pattern.permute.xlu0 6
        %1578 = vperm.xlu0 %1577, %v1460
        %v1579 = vpop.permute.xlu0 %1578
        %v1581 = vmul.f32 %v1457, %v1575
        %v1582 = vmul.f32 %v1458, %v1579
        %1585 = vrot.lane.b32.xlu0 %v1581, 122
        %v1586 = vpop.permute.xlu0 %1585
        %1587 = vrot.lane.b32.xlu0 %v1582, 122
        %v1588 = vpop.permute.xlu0 %1587
        %v1591 = vadd.f32 %v1571, %v1586
        %v1592 = vadd.f32 %v1572, %v1588
        %v1593 = vld [vmem:[%s12] sm:$0xff]
        %v1594 = vld [vmem:[%s12 + $0x8] sm:$0xff]
        %1596 = vset.pattern.permute.xlu0 0
        %1597 = vperm.xlu0 %1596, %v1593
        %v1598 = vpop.permute.xlu0 %1597
        %1601 = vset.pattern.permute.xlu0 0
        %1602 = vperm.xlu0 %1601, %v1594
        %v1603 = vpop.permute.xlu0 %1602
        %v1605 = vmul.f32 %v1591, %v1598
        %v1606 = vmul.f32 %v1592, %v1603
        %v1607 = vld [vmem:[%s13] sm:$0xff]
        %v1608 = vld [vmem:[%s13 + $0x8] sm:$0xff]
        %1610 = vset.pattern.permute.xlu0 0
        %1611 = vperm.xlu0 %1610, %v1607
        %v1612 = vpop.permute.xlu0 %1611
        %1615 = vset.pattern.permute.xlu0 0
        %1616 = vperm.xlu0 %1615, %v1608
        %v1617 = vpop.permute.xlu0 %1616
        %v1619 = vadd.f32 %v1605, %v1612
        %v1620 = vadd.f32 %v1606, %v1617
        %v1621 = vsub.f32 0.0, %v1619
        %v1622 = vsub.f32 0.0, %v1620
        %v1623 = vmul.f32 %v1621, 1.442695
        %v1624 = vpow.pop %v1623
        %v1625 = vmul.f32 %v1622, 1.442695
        %v1626 = vpow.pop %v1625
        %v1627 = vadd.f32 %v1624, 1.0
        %v1628 = vadd.f32 %v1626, 1.0
        %v1629 = vrcp.pop %v1627
        %v1630 = vrcp.pop %v1628
        %v1631 = vmul.f32 %v1445, %v1629
        %v1632 = vmul.f32 %v1446, %v1630
        %v1633 = vadd.f32 %v1631, %v467
        %v1634 = vadd.f32 %v1632, %v468
        %v1635 = vmax.f32 %v1633, 0.0
        %v1636 = vmax.f32 %v1634, 0.0
        %1637 = vst.msk [vmem:[%s460] sm:$0xff] %vm1068, %v1635
        %1638 = vst.msk [vmem:[%s460 + $0x8] sm:$0xff] %vm1068, %v1636
        %s1639 = sand.u32 %s335, 1
        %s1640 = scalar_lea.sflag [#allocation4], %s1639
        %s1641 = sand.u32 %s335, 1
        %s1642 = smul.addr %s1641, 16
        %s1643 = scalar_lea.vmem [#allocation3], %s1642
        // Predicated region
        $region77: #{my_icb_forward.1} parent=75 // pred_check
          %p1644 = pneg %p345
        $region78: #{my_icb_forward.1} parent=75 // pred_check_branch
          %1646 = sbr.rel (%p1644) target = $region80
        $region79: #{my_icb_forward.1} parent=75 // pred_region
          %1648 = vsyncadd %s1640, 0
          %s1649 = smul.addr %s28, 2
          %s1650 = smul.addr %s1649, 8
          %s1651 = scalar_lea.hbm %s14, %s1650
          %s1652 = sshll.u32 %s1643, 4
          %s1653 = int_to_ptr.vmem [resolvable:$true] %s1652
          %s1654 = sshll.u32 %s1651, 4
          %s1655 = int_to_ptr.hbm [resolvable:$true] %s1654
          %1660 = dma.vmem_to_hbm [thread:$0]  %s1653, 256, %s1655, %s1640, 128, 128, 8
        $region80: #{my_icb_forward.1} parent=75 // pred_fallthru
          _
      $region76: #{my_icb_forward.1} parent=5 // pred_fallthru
        _
      %p1661 = scmp.le.s32.totalorder 2, %s23
      // Predicated region
      $region81: #{my_icb_forward.1} parent=5 // pred_check
        %p1662 = pneg %p1661
      $region82: #{my_icb_forward.1} parent=5 // pred_check_branch
        %1664 = sbr.rel (%p1662) target = $region84
      $region83: #{my_icb_forward.1} parent=5 // pred_region
        %s1665 = ssub.s32 %s23, 2
        // Predicated region
        $region85: #{my_icb_forward.1} parent=83 // pred_check
          %p1666 = pneg %p351
        $region86: #{my_icb_forward.1} parent=83 // pred_check_branch
          %1668 = sbr.rel (%p1666) target = $region88
        $region87: #{my_icb_forward.1} parent=83 // pred_region
          %s1669 = sand.u32 %s336, 1
          %s1670 = scalar_lea.sflag [#allocation4], %s1669
          %s1671 = sand.u32 %s336, 1
          %s1672 = smul.addr %s1671, 16
          %s1673 = scalar_lea.vmem [#allocation3], %s1672
          %1675 = dma.done %s1670, 256
        $region88: #{my_icb_forward.1} parent=83 // pred_fallthru
          _
      $region84: #{my_icb_forward.1} parent=5 // pred_fallthru
        _
    $region6: #{my_icb_forward.1} parent=1 // loop_footer
      %s27 = sadd.s32 1, %s23
    $region7: #{my_icb_forward.1} parent=1 // loop_footer_branch
      %22 = sbr.rel target = $region3
    $region8: #{my_icb_forward.1} parent=1 // loop_exit
      _
    %1676 = vsyncpa [#allocation4], 1
    %s1677 = scalar_lea.sflag [#allocation4], 1
    %1678 = vsyncpa %s1677, 1

</llo_original>
